<compile_context>
chip_gen: v6e
topology: v6e:2x2x1
jax: 0.10.0
libtpu: 0.0.40
codegen_flags: <defaults>
</compile_context>

<pallas_src>
import jax
import jax.numpy as jnp
import numpy as np
from jax.experimental import pallas as pl
from jax.experimental.pallas import tpu as pltpu

KSIZE = 7
PAD = (KSIZE - 1) // 2  # 3


def _mix(w, a):
    """Channel mix w @ a.  MXU matmul for real contraction sizes; exact VPU
    broadcast-sum for degenerate (<8) contractions (tiny test configs)."""
    if w.shape[-1] >= 8:
        return jnp.dot(w, a, preferred_element_type=jnp.float32)
    return jnp.sum(w[:, :, None] * a[None, :, :], axis=1)


def _cbam_ca_kernel(b_sp_ref, w1_ref, wh_ref, ww_ref, ah_ref, aw_ref, kz_ref,
                    x_ref, o_ref):
    # b_sp_ref : SMEM (1,)       folded BN shift of the spatial conv
    # w1_ref   : VMEM (Cmid, C)  conv_1x1 weight (1x1 squeezed)
    # wh_ref   : VMEM (C, Cmid)  F_h weight
    # ww_ref   : VMEM (C, Cmid)  F_w weight
    # ah_ref   : VMEM (L, L)     "mean over W then broadcast over W" matrix
    # aw_ref   : VMEM (L, L)     "mean over H then broadcast over H" matrix
    # kz_ref   : VMEM (2L, L)    7x7 conv (BN scale folded) as a matrix,
    #                            rows = [max-channel ; mean-channel]
    # x_ref    : VMEM (TB, C, L) lane-dense input block
    # o_ref    : VMEM (TB, C, L)
    tb = x_ref.shape[0]
    w1 = w1_ref[...]
    wh = wh_ref[...]
    ww = ww_ref[...]
    b_sp = b_sp_ref[0]

    for b in range(tb):                        # static unroll; TB is small
        x = x_ref[b].astype(jnp.float32)       # (C, L) single dense load

        # ---- CA_Block: pool + re-broadcast via MXU matmuls ----
        ph = jnp.dot(x, ah_ref[...], preferred_element_type=jnp.float32)  # (C, L)
        pw = jnp.dot(x, aw_ref[...], preferred_element_type=jnp.float32)  # (C, L)
        s_h = jax.nn.sigmoid(_mix(wh, jnp.maximum(_mix(w1, ph), 0.0)))    # (C, L)
        s_w = jax.nn.sigmoid(_mix(ww, jnp.maximum(_mix(w1, pw), 0.0)))    # (C, L)
        xc = x * s_h * s_w                                                # (C, L)

        # ---- SpatialGate: channel pool + 7x7 conv (+BN) as one matmul ----
        zmax = jnp.max(xc, axis=0, keepdims=True)                         # (1, L)
        zmean = jnp.mean(xc, axis=0, keepdims=True)                       # (1, L)
        z = jnp.concatenate([zmax, zmean], axis=1)                        # (1, 2L)
        y = jnp.dot(z, kz_ref[...], preferred_element_type=jnp.float32) + b_sp
        gate = jax.nn.sigmoid(y)                                          # (1, L)

        # Spatial gate + residual (pre-gated x), one dense lane-aligned store.
        o_ref[b] = (xc * gate + x).astype(o_ref.dtype)


def _pick_tb(n, c, l, itemsize=4, budget_bytes=2 << 20, cap=8):
    """Largest divisor of n so the x block stays small (v7x 64 MiB safe) and,
    when n >= 2, the grid keeps >= 2 steps for megacore sharding."""
    best = 1
    for tb in range(1, min(n, cap) + 1):
        if n % tb:
            continue
        if n >= 2 and n // tb < 2:
            continue
        if tb * c * l * itemsize > budget_bytes:
            continue
        best = tb
    return best


def _spatial_conv_matrix(w_sp, H, W):
    """Express Conv2d(2->1, k=7, pad=3) with BN scale already folded into
    w_sp (2,7,7) as a dense (2*H*W, H*W) matrix acting on [zmax ; zmean]."""
    L = H * W
    # tap[li, lo] = flat (kh, kw) tap feeding output lo from input li; 49 = none
    tap = np.full((L, L), KSIZE * KSIZE, dtype=np.int32)
    for ho in range(H):
        for wo in range(W):
            lo = ho * W + wo
            for kh in range(KSIZE):
                hi = ho + kh - PAD
                if hi < 0 or hi >= H:
                    continue
                for kw in range(KSIZE):
                    wi = wo + kw - PAD
                    if wi < 0 or wi >= W:
                        continue
                    tap[hi * W + wi, lo] = kh * KSIZE + kw
    w_ext = jnp.concatenate(
        [w_sp.reshape(2, KSIZE * KSIZE).astype(jnp.float32),
         jnp.zeros((2, 1), jnp.float32)], axis=1)                   # (2, 50)
    return jnp.concatenate([w_ext[0][tap], w_ext[1][tap]], axis=0)  # (2L, L)


def cbam_ca(x, w1, wh, ww, conv_sp, bn_gamma, bn_beta, bn_mean, bn_var, eps=1e-5):
    """x: (N, C, H, W); w1: (Cmid, C); wh/ww: (C, Cmid); conv_sp: (1, 2, 7, 7)."""
    N, C, H, W = x.shape
    Cmid = w1.shape[0]
    L = H * W

    # Fold BatchNorm (inference) into the spatial conv: y = s*conv(z) + t.
    s = bn_gamma / jnp.sqrt(bn_var + eps)                       # (1,)
    kz = _spatial_conv_matrix(conv_sp[0] * s[0], H, W)          # (2L, L)
    b_sp = (bn_beta - bn_mean * s).astype(jnp.float32)          # (1,)

    # Pool-and-rebroadcast matrices (pure structure constants).
    ii = np.arange(L)
    ah = jnp.asarray(np.equal.outer(ii // W, ii // W).astype(np.float32) / W)
    aw = jnp.asarray(np.equal.outer(ii % W, ii % W).astype(np.float32) / H)

    tb = _pick_tb(N, C, L)
    x_flat = x.reshape(N, C, L)                                 # lane-dense view

    out_flat = pl.pallas_call(
        _cbam_ca_kernel,
        out_shape=jax.ShapeDtypeStruct((N, C, L), x.dtype),
        grid_spec=pltpu.PrefetchScalarGridSpec(
            num_scalar_prefetch=0,
            grid=(N // tb,),
            in_specs=[
                pl.BlockSpec(memory_space=pltpu.MemorySpace.SMEM),    # b_sp
                pl.BlockSpec((Cmid, C), lambda b: (0, 0)),            # w1
                pl.BlockSpec((C, Cmid), lambda b: (0, 0)),            # wh
                pl.BlockSpec((C, Cmid), lambda b: (0, 0)),            # ww
                pl.BlockSpec((L, L), lambda b: (0, 0)),               # Ah
                pl.BlockSpec((L, L), lambda b: (0, 0)),               # Aw
                pl.BlockSpec((2 * L, L), lambda b: (0, 0)),           # Kz
                pl.BlockSpec((tb, C, L), lambda b: (b, 0, 0)),        # x
            ],
            out_specs=pl.BlockSpec((tb, C, L), lambda b: (b, 0, 0)),
        ),
        compiler_params=pltpu.CompilerParams(
            # Independent per-image blocks -> megacore sharding on v7x.
            dimension_semantics=("parallel",),
            # Resident working set is ~2 MiB; 32 MiB is ample and safe on all
            # of v5e/v6e (128 MiB) and v7x (64 MiB).
            vmem_limit_bytes=32 * 1024 * 1024,
        ),
    )(b_sp, w1.astype(jnp.float32), wh.astype(jnp.float32),
      ww.astype(jnp.float32), ah, aw, kz, x_flat)

    return out_flat.reshape(N, C, H, W)


def _reference(x, w1, wh, ww, conv_sp, bn_gamma, bn_beta, bn_mean, bn_var, eps=1e-5):
    """Pure-JAX reference mirroring the PyTorch CBAM_CA forward (inference)."""
    N, C, H, W = x.shape
    # CA_Block
    x_h = jnp.mean(x, axis=3)                                      # (N, C, H)
    x_w = jnp.mean(x, axis=2)                                      # (N, C, W)
    cat = jnp.concatenate([x_h, x_w], axis=2)                      # (N, C, H+W)
    mid = jax.nn.relu(jnp.einsum("oc,ncl->nol", w1, cat))          # (N, Cmid, H+W)
    s_h = jax.nn.sigmoid(jnp.einsum("cm,nml->ncl", wh, mid[:, :, :H]))  # (N, C, H)
    s_w = jax.nn.sigmoid(jnp.einsum("cm,nml->ncl", ww, mid[:, :, H:]))  # (N, C, W)
    xc = x * s_h[:, :, :, None] * s_w[:, :, None, :]
    # SpatialGate
    z = jnp.concatenate([jnp.max(xc, axis=1, keepdims=True),
                         jnp.mean(xc, axis=1, keepdims=True)], axis=1)
    y = jax.lax.conv_general_dilated(
        z, conv_sp, window_strides=(1, 1), padding=((PAD, PAD), (PAD, PAD)),
        dimension_numbers=("NCHW", "OIHW", "NCHW"))
    y = (bn_gamma[None, :, None, None] * (y - bn_mean[None, :, None, None])
         / jnp.sqrt(bn_var[None, :, None, None] + eps)
         + bn_beta[None, :, None, None])
    return xc * jax.nn.sigmoid(y) + x


if __name__ == "__main__":
    key = jax.random.PRNGKey(0)
    kx, k1, k2, k3, k4 = jax.random.split(key, 5)

    # Small shapes consistent with the module (channel-gate reduction = 2).
    N, C, H, W = 2, 4, 16, 16
    Cmid = C // 2

    x = jax.random.normal(kx, (N, C, H, W), dtype=jnp.float32)

    # CA_Block parameters (Conv2d 1x1, bias=False; squeezed to 2-D).
    w1 = 0.3 * jax.random.normal(k1, (Cmid, C), dtype=jnp.float32)   # conv_1x1
    wh = 0.3 * jax.random.normal(k2, (C, Cmid), dtype=jnp.float32)   # F_h
    ww = 0.3 * jax.random.normal(k3, (C, Cmid), dtype=jnp.float32)   # F_w

    # SpatialGate: Conv2d(2,1,7,bias=False) + BatchNorm2d(1) (inference).
    conv_sp = 0.1 * jax.random.normal(k4, (1, 2, KSIZE, KSIZE), dtype=jnp.float32)
    bn_gamma = jnp.array([0.9], dtype=jnp.float32)
    bn_beta = jnp.array([0.05], dtype=jnp.float32)
    bn_mean = jnp.array([0.1], dtype=jnp.float32)    # running_mean
    bn_var = jnp.array([0.8], dtype=jnp.float32)     # running_var

    out = cbam_ca(x, w1, wh, ww, conv_sp, bn_gamma, bn_beta, bn_mean, bn_var)
    out = jax.block_until_ready(out)

    ref = _reference(x, w1, wh, ww, conv_sp, bn_gamma, bn_beta, bn_mean, bn_var)
    # Tolerance allows for reduced-precision MXU passes on f32 matmuls (kernel)
    # and XLA's default matmul/conv precision (reference); any structural or
    # semantic error would be orders of magnitude larger.
    np.testing.assert_allclose(np.asarray(out), np.asarray(ref), atol=1e-2, rtol=1e-2)

    print("KERNEL_OK")
</pallas_src>

<mosaic_0001>
module attributes {stable_mosaic.version = 11 : i64} {
  func.func @_cbam_ca_kernel(%arg0: i32, %arg1: memref<1xf32, #tpu.memory_space<smem>>, %arg2: memref<2x4xf32, #tpu.memory_space<vmem>>, %arg3: memref<4x2xf32, #tpu.memory_space<vmem>>, %arg4: memref<4x2xf32, #tpu.memory_space<vmem>>, %arg5: memref<256x256xf32, #tpu.memory_space<vmem>>, %arg6: memref<256x256xf32, #tpu.memory_space<vmem>>, %arg7: memref<512x256xf32, #tpu.memory_space<vmem>>, %arg8: memref<1x4x256xf32, #tpu.memory_space<vmem>>, %arg9: memref<1x4x256xf32, #tpu.memory_space<vmem>>) attributes {dimension_semantics = [#tpu.dimension_semantics<parallel>], iteration_bounds = array<i64: 2>, scalar_prefetch = 0 : i64, scratch_operands = 0 : i64, tpu.core_type = #tpu.core_type<tc>, window_params = [{transform_indices = @transform_0, window_bounds = array<i64: 1>}, {pipeline_mode = #tpu.pipeline_mode<synchronous>, transform_indices = @transform_1, window_bounds = array<i64: 2, 4>}, {pipeline_mode = #tpu.pipeline_mode<synchronous>, transform_indices = @transform_2, window_bounds = array<i64: 4, 2>}, {pipeline_mode = #tpu.pipeline_mode<synchronous>, transform_indices = @transform_3, window_bounds = array<i64: 4, 2>}, {pipeline_mode = #tpu.pipeline_mode<synchronous>, transform_indices = @transform_4, window_bounds = array<i64: 256, 256>}, {pipeline_mode = #tpu.pipeline_mode<synchronous>, transform_indices = @transform_5, window_bounds = array<i64: 256, 256>}, {pipeline_mode = #tpu.pipeline_mode<synchronous>, transform_indices = @transform_6, window_bounds = array<i64: 512, 256>}, {transform_indices = @transform_7, window_bounds = array<i64: 1, 4, 256>}, {transform_indices = @transform_8, window_bounds = array<i64: 1, 4, 256>}]} {
    %c0 = arith.constant 0 : index
    %c0_0 = arith.constant 0 : index
    %0 = vector.load %arg2[%c0, %c0_0] : memref<2x4xf32, #tpu.memory_space<vmem>>, vector<2x4xf32>
    %c0_1 = arith.constant 0 : index
    %c0_2 = arith.constant 0 : index
    %1 = vector.load %arg3[%c0_1, %c0_2] : memref<4x2xf32, #tpu.memory_space<vmem>>, vector<4x2xf32>
    %c0_3 = arith.constant 0 : index
    %c0_4 = arith.constant 0 : index
    %2 = vector.load %arg4[%c0_3, %c0_4] : memref<4x2xf32, #tpu.memory_space<vmem>>, vector<4x2xf32>
    %c0_5 = arith.constant 0 : index
    %3 = memref.load %arg1[%c0_5] : memref<1xf32, #tpu.memory_space<smem>>
    %c0_6 = arith.constant 0 : index
    %c0_7 = arith.constant 0 : index
    %c0_8 = arith.constant 0 : index
    %4 = vector.load %arg8[%c0_6, %c0_7, %c0_8] : memref<1x4x256xf32, #tpu.memory_space<vmem>>, vector<1x4x256xf32>
    %5 = vector.shape_cast %4 : vector<1x4x256xf32> to vector<4x256xf32>
    %c0_9 = arith.constant 0 : index
    %c0_10 = arith.constant 0 : index
    %6 = vector.load %arg5[%c0_9, %c0_10] : memref<256x256xf32, #tpu.memory_space<vmem>>, vector<256x256xf32>
    %cst = arith.constant dense<0.000000e+00> : vector<4x256xf32>
    %7 = tpu.matmul %5, %6, %cst {dimension_numbers = #tpu.dot_dimension_numbers<[1], [0], [0], [1], [0, 0, 1, 1], [], []>} : vector<4x256xf32>, vector<256x256xf32>, vector<4x256xf32> -> vector<4x256xf32>
    %c0_11 = arith.constant 0 : index
    %c0_12 = arith.constant 0 : index
    %8 = vector.load %arg6[%c0_11, %c0_12] : memref<256x256xf32, #tpu.memory_space<vmem>>, vector<256x256xf32>
    %cst_13 = arith.constant dense<0.000000e+00> : vector<4x256xf32>
    %9 = tpu.matmul %5, %8, %cst_13 {dimension_numbers = #tpu.dot_dimension_numbers<[1], [0], [0], [1], [0, 0, 1, 1], [], []>} : vector<4x256xf32>, vector<256x256xf32>, vector<4x256xf32> -> vector<4x256xf32>
    %10 = vector.shape_cast %0 : vector<2x4xf32> to vector<2x4x1xf32>
    %11 = vector.shape_cast %7 : vector<4x256xf32> to vector<1x4x256xf32>
    %12 = vector.broadcast %10 : vector<2x4x1xf32> to vector<2x4x256xf32>
    %13 = vector.broadcast %11 : vector<1x4x256xf32> to vector<2x4x256xf32>
    %14 = arith.mulf %12, %13 : vector<2x4x256xf32>
    %cst_14 = arith.constant dense<0.000000e+00> : vector<2x256xf32>
    %15 = vector.multi_reduction <add>, %14, %cst_14 [1] : vector<2x4x256xf32> to vector<2x256xf32>
    %cst_15 = arith.constant 0.000000e+00 : f32
    %16 = vector.broadcast %cst_15 : f32 to vector<2x256xf32>
    %17 = arith.maximumf %15, %16 : vector<2x256xf32>
    %18 = vector.shape_cast %1 : vector<4x2xf32> to vector<4x2x1xf32>
    %19 = vector.shape_cast %17 : vector<2x256xf32> to vector<1x2x256xf32>
    %20 = vector.broadcast %18 : vector<4x2x1xf32> to vector<4x2x256xf32>
    %21 = vector.broadcast %19 : vector<1x2x256xf32> to vector<4x2x256xf32>
    %22 = arith.mulf %20, %21 : vector<4x2x256xf32>
    %cst_16 = arith.constant dense<0.000000e+00> : vector<4x256xf32>
    %23 = vector.multi_reduction <add>, %22, %cst_16 [1] : vector<4x2x256xf32> to vector<4x256xf32>
    %24 = arith.negf %23 : vector<4x256xf32>
    %25 = math.exp %24 : vector<4x256xf32>
    %cst_17 = arith.constant 1.000000e+00 : f32
    %26 = vector.broadcast %cst_17 : f32 to vector<4x256xf32>
    %27 = arith.addf %26, %25 : vector<4x256xf32>
    %28 = arith.divf %26, %27 : vector<4x256xf32>
    %29 = vector.shape_cast %0 : vector<2x4xf32> to vector<2x4x1xf32>
    %30 = vector.shape_cast %9 : vector<4x256xf32> to vector<1x4x256xf32>
    %31 = vector.broadcast %29 : vector<2x4x1xf32> to vector<2x4x256xf32>
    %32 = vector.broadcast %30 : vector<1x4x256xf32> to vector<2x4x256xf32>
    %33 = arith.mulf %31, %32 : vector<2x4x256xf32>
    %cst_18 = arith.constant dense<0.000000e+00> : vector<2x256xf32>
    %34 = vector.multi_reduction <add>, %33, %cst_18 [1] : vector<2x4x256xf32> to vector<2x256xf32>
    %cst_19 = arith.constant 0.000000e+00 : f32
    %35 = vector.broadcast %cst_19 : f32 to vector<2x256xf32>
    %36 = arith.maximumf %34, %35 : vector<2x256xf32>
    %37 = vector.shape_cast %2 : vector<4x2xf32> to vector<4x2x1xf32>
    %38 = vector.shape_cast %36 : vector<2x256xf32> to vector<1x2x256xf32>
    %39 = vector.broadcast %37 : vector<4x2x1xf32> to vector<4x2x256xf32>
    %40 = vector.broadcast %38 : vector<1x2x256xf32> to vector<4x2x256xf32>
    %41 = arith.mulf %39, %40 : vector<4x2x256xf32>
    %cst_20 = arith.constant dense<0.000000e+00> : vector<4x256xf32>
    %42 = vector.multi_reduction <add>, %41, %cst_20 [1] : vector<4x2x256xf32> to vector<4x256xf32>
    %43 = arith.negf %42 : vector<4x256xf32>
    %44 = math.exp %43 : vector<4x256xf32>
    %cst_21 = arith.constant 1.000000e+00 : f32
    %45 = vector.broadcast %cst_21 : f32 to vector<4x256xf32>
    %46 = arith.addf %45, %44 : vector<4x256xf32>
    %47 = arith.divf %45, %46 : vector<4x256xf32>
    %48 = arith.mulf %5, %28 : vector<4x256xf32>
    %49 = arith.mulf %48, %47 : vector<4x256xf32>
    %cst_22 = arith.constant dense<0xFF800000> : vector<256xf32>
    %50 = vector.multi_reduction <maximumf>, %49, %cst_22 [0] : vector<4x256xf32> to vector<256xf32>
    %51 = vector.shape_cast %50 : vector<256xf32> to vector<1x256xf32>
    %cst_23 = arith.constant dense<0.000000e+00> : vector<256xf32>
    %52 = vector.multi_reduction <add>, %49, %cst_23 [0] : vector<4x256xf32> to vector<256xf32>
    %53 = vector.shape_cast %52 : vector<256xf32> to vector<1x256xf32>
    %cst_24 = arith.constant 4.000000e+00 : f32
    %54 = vector.broadcast %cst_24 : f32 to vector<1x256xf32>
    %55 = arith.divf %53, %54 : vector<1x256xf32>
    %56 = tpu.concatenate %51, %55 in 1 : vector<1x256xf32>, vector<1x256xf32> -> vector<1x512xf32>
    %c0_25 = arith.constant 0 : index
    %c0_26 = arith.constant 0 : index
    %57 = vector.load %arg7[%c0_25, %c0_26] : memref<512x256xf32, #tpu.memory_space<vmem>>, vector<512x256xf32>
    %cst_27 = arith.constant dense<0.000000e+00> : vector<1x256xf32>
    %58 = tpu.matmul %56, %57, %cst_27 {dimension_numbers = #tpu.dot_dimension_numbers<[1], [0], [0], [1], [0, 0, 1, 1], [], []>} : vector<1x512xf32>, vector<512x256xf32>, vector<1x256xf32> -> vector<1x256xf32>
    %59 = vector.broadcast %3 : f32 to vector<1x256xf32>
    %60 = arith.addf %58, %59 : vector<1x256xf32>
    %61 = arith.negf %60 : vector<1x256xf32>
    %62 = math.exp %61 : vector<1x256xf32>
    %cst_28 = arith.constant 1.000000e+00 : f32
    %63 = vector.broadcast %cst_28 : f32 to vector<1x256xf32>
    %64 = arith.addf %63, %62 : vector<1x256xf32>
    %65 = arith.divf %63, %64 : vector<1x256xf32>
    %66 = vector.broadcast %65 : vector<1x256xf32> to vector<4x256xf32>
    %67 = arith.mulf %49, %66 : vector<4x256xf32>
    %68 = arith.addf %67, %5 : vector<4x256xf32>
    %c0_29 = arith.constant 0 : index
    %c0_30 = arith.constant 0 : index
    %c0_31 = arith.constant 0 : index
    %69 = vector.load %arg9[%c0_29, %c0_30, %c0_31] : memref<1x4x256xf32, #tpu.memory_space<vmem>>, vector<1x4x256xf32>
    %70 = vector.shape_cast %69 : vector<1x4x256xf32> to vector<4x256xf32>
    %71 = vector.shape_cast %68 : vector<4x256xf32> to vector<1x4x256xf32>
    tpu.vector_store %arg9[%c0_29, %c0_30, %c0_31], %71 {strides = array<i32>} : memref<1x4x256xf32, #tpu.memory_space<vmem>>, vector<1x4x256xf32>,
    return
  }
  func.func @transform_0(%arg0: i32) -> i32 {
    %c0_i32 = arith.constant 0 : i32
    %c0_i32_0 = arith.constant 0 : i32
    return %c0_i32 : i32
  }
  func.func @transform_1(%arg0: i32) -> (i32, i32) {
    %c0_i32 = arith.constant 0 : i32
    %c0_i32_0 = arith.constant 0 : i32
    %c0_i32_1 = arith.constant 0 : i32
    return %c0_i32, %c0_i32_0 : i32, i32
  }
  func.func @transform_2(%arg0: i32) -> (i32, i32) {
    %c0_i32 = arith.constant 0 : i32
    %c0_i32_0 = arith.constant 0 : i32
    %c0_i32_1 = arith.constant 0 : i32
    return %c0_i32, %c0_i32_0 : i32, i32
  }
  func.func @transform_3(%arg0: i32) -> (i32, i32) {
    %c0_i32 = arith.constant 0 : i32
    %c0_i32_0 = arith.constant 0 : i32
    %c0_i32_1 = arith.constant 0 : i32
    return %c0_i32, %c0_i32_0 : i32, i32
  }
  func.func @transform_4(%arg0: i32) -> (i32, i32) {
    %c0_i32 = arith.constant 0 : i32
    %c0_i32_0 = arith.constant 0 : i32
    %c0_i32_1 = arith.constant 0 : i32
    return %c0_i32, %c0_i32_0 : i32, i32
  }
  func.func @transform_5(%arg0: i32) -> (i32, i32) {
    %c0_i32 = arith.constant 0 : i32
    %c0_i32_0 = arith.constant 0 : i32
    %c0_i32_1 = arith.constant 0 : i32
    return %c0_i32, %c0_i32_0 : i32, i32
  }
  func.func @transform_6(%arg0: i32) -> (i32, i32) {
    %c0_i32 = arith.constant 0 : i32
    %c0_i32_0 = arith.constant 0 : i32
    %c0_i32_1 = arith.constant 0 : i32
    return %c0_i32, %c0_i32_0 : i32, i32
  }
  func.func @transform_7(%arg0: i32) -> (i32, i32, i32) {
    %c0_i32 = arith.constant 0 : i32
    %c0_i32_0 = arith.constant 0 : i32
    %c0_i32_1 = arith.constant 0 : i32
    return %arg0, %c0_i32, %c0_i32_0 : i32, i32, i32
  }
  func.func @transform_8(%arg0: i32) -> (i32, i32, i32) {
    %c0_i32 = arith.constant 0 : i32
    %c0_i32_0 = arith.constant 0 : i32
    %c0_i32_1 = arith.constant 0 : i32
    return %arg0, %c0_i32, %c0_i32_0 : i32, i32, i32
  }
}

</mosaic_0001>

<llo_original>
// kernel: tpu_custom_call.1
$region0: #{tpu_custom_call.1}
  #allocation0 [shape = 'u32[]', space=smem, size = 0x4, offset = 0x4, fixed_abs, tag = 'smem constant byte address 0x4 - core index']
  #allocation1 [shape = 'u32[144,128]{1,0:T(1,128)}', space=vmem, size = 0x12000, scoped, tag = 'internal scratch']
  #allocation2 [shape = 'f32[1]{0:T(128)S(6)}', space=smem, size = 0x200, scoped, tag = 'scoped memory for tpu_custom_call.1']
  %s0 = inlined_call_operand.<no memory space> [shape: f32[1], index: 0, kind: input, shape index: {}]
  %s1 = inlined_call_operand.vmem [shape: f32[2,4], index: 1, kind: input, shape index: {}]
  %s2 = inlined_call_operand.vmem [shape: f32[4,2], index: 2, kind: input, shape index: {}]
  %s3 = inlined_call_operand.vmem [shape: f32[4,2], index: 3, kind: input, shape index: {}]
  %s4 = inlined_call_operand.hbm [shape: f32[256,256], index: 4, kind: input, shape index: {}]
  %s5 = inlined_call_operand.hbm [shape: f32[256,256], index: 5, kind: input, shape index: {}]
  %s6 = inlined_call_operand.hbm [shape: f32[512,256], index: 6, kind: input, shape index: {}]
  %s7 = inlined_call_operand.vmem [shape: f32[2,4,256], index: 7, kind: input, shape index: {}]
  %s8 = inlined_call_operand.hbm [shape: f32[2,4,256], index: 8, kind: output, shape index: {}]
  %s9 = sld [smem:[#allocation0]]
  $region77: #{tpu_custom_call.1} parent=0
    _
  %s11 = ssub.s32 1, %s9
  %s12 = scalar_select 0, %s11, %s9
  %13 = sst [smem:[#allocation2]] %s0
  $region1: #{tpu_custom_call.1} parent=0
    #allocation3 [shape = 'u8[262144]{0}', space=vmem, size = 0x40000, scoped, tag = 'input window, operand 4, single buffered']
    #allocation4 [shape = 's32[2]{0}', space=sflag, size = 0x8, scoped, tag = 'scoped memory for tpu_custom_call.1']
    #allocation5 [shape = 's32[2]{0}', space=sflag, size = 0x8, scoped, tag = 'scoped memory for tpu_custom_call.1']
    #allocation6 [shape = 'u8[262144]{0}', space=vmem, size = 0x40000, scoped, tag = 'input window, operand 5, single buffered']
    #allocation7 [shape = 's32[1]{0}', space=sflag, size = 0x4, scoped, tag = 'scoped memory for tpu_custom_call.1']
    #allocation8 [shape = 'u8[524288]{0}', space=vmem, size = 0x80000, scoped, tag = 'input window, operand 6, single buffered']
    #allocation9 [shape = 'u8[8192]{0}', space=vmem, size = 0x2000, scoped, tag = 'output window, operand 0']
    %14 = vsyncpa [#allocation4], 0
    %15 = vsyncpa [#allocation7], 0
    %16 = vsyncpa [#allocation5], 0
    %s17 = scalar_lea.sflag [#allocation5], 1
    %18 = vsyncpa %s17, 0
    loop: start=0, step=1, limit=4
    $region2: #{tpu_custom_call.1} parent=1 // loop_pre_header
      _
    $region3: #{tpu_custom_call.1} parent=1 // loop_header
      %s20 = sphi 0, %s24
      %p21 = scmp.ge.s32.totalorder %s20, 4
      %s28 = sphi 0, %s28
      %s30 = sphi 0, %s28
      %s31 = sphi 0, %s30
      %s45 = sphi 0, %s31
      %s49 = sphi 0, %s49
      %s51 = sphi 0, %s49
      %s52 = sphi 0, %s51
      %s66 = sphi 0, %s52
      %s70 = sphi 0, %s70
      %s72 = sphi 0, %s70
      %s73 = sphi 0, %s72
      %s87 = sphi 0, %s73
      %s91 = sphi 0, %s91
      %s93 = sphi 0, %s91
      %s94 = sphi 0, %s93
      %s108 = sphi 0, %s94
      %s112 = sphi 0, %s112
      %s114 = sphi 0, %s112
      %s115 = sphi 0, %s114
      %s129 = sphi 0, %s115
      %s133 = sphi 0, %s133
      %s135 = sphi 0, %s133
      %s136 = sphi 0, %s135
      %s150 = sphi 0, %s136
      %s154 = sphi 0, %s154
      %s156 = sphi 0, %s154
      %s157 = sphi 0, %s156
      %s171 = sphi 0, %s157
      %s177 = sphi 0, %s179
      %s180 = sphi 0, %s177
      %s181 = sphi 0, %s180
      %s197 = sphi 0, %s181
      %s203 = sphi 0, %s205
      %s206 = sphi 0, %s203
      %s207 = sphi 0, %s206
      %s223 = sphi 0, %s207
    $region4: #{tpu_custom_call.1} parent=1 // loop_header_branch
      %23 = sbr.rel (%p21) target = $region8
    $region5: #{tpu_custom_call.1} parent=1 // loop_body
      %s25 = ssub.s32 %s20, 1
      %s26 = ssub.s32 %s20, 2
      %s27 = sadd.s32 %s20, 1
      %s29 = sadd.s32 %s28, 1
      %p32 = scmp.eq.s32.totalorder %s20, 1
      %p33 = scmp.ne.s32.totalorder %s28, %s30
      %p34 = scmp.eq.s32.totalorder %s20, 0
      %p35 = por %p33, %p34
      %p36 = scmp.ne.s32.totalorder %s28, %s30
      %p37 = scmp.eq.s32.totalorder %s25, 1
      %p38 = por %p36, %p37
      %p39 = scmp.ne.s32.totalorder %s30, %s31
      %p40 = scmp.eq.s32.totalorder %s25, 0
      %p41 = por %p39, %p40
      %p42 = scmp.ne.s32.totalorder %s30, %s31
      %p43 = scmp.eq.s32.totalorder %s26, 1
      %p44 = por %p42, %p43
      %p46 = scmp.ne.s32.totalorder %s31, %s45
      %p47 = scmp.eq.s32.totalorder %s26, 0
      %p48 = por %p46, %p47
      %s50 = sadd.s32 %s49, 1
      %p53 = scmp.eq.s32.totalorder %s20, 1
      %p54 = scmp.ne.s32.totalorder %s49, %s51
      %p55 = scmp.eq.s32.totalorder %s20, 0
      %p56 = por %p54, %p55
      %p57 = scmp.ne.s32.totalorder %s49, %s51
      %p58 = scmp.eq.s32.totalorder %s25, 1
      %p59 = por %p57, %p58
      %p60 = scmp.ne.s32.totalorder %s51, %s52
      %p61 = scmp.eq.s32.totalorder %s25, 0
      %p62 = por %p60, %p61
      %p63 = scmp.ne.s32.totalorder %s51, %s52
      %p64 = scmp.eq.s32.totalorder %s26, 1
      %p65 = por %p63, %p64
      %p67 = scmp.ne.s32.totalorder %s52, %s66
      %p68 = scmp.eq.s32.totalorder %s26, 0
      %p69 = por %p67, %p68
      %s71 = sadd.s32 %s70, 1
      %p74 = scmp.eq.s32.totalorder %s20, 1
      %p75 = scmp.ne.s32.totalorder %s70, %s72
      %p76 = scmp.eq.s32.totalorder %s20, 0
      %p77 = por %p75, %p76
      %p78 = scmp.ne.s32.totalorder %s70, %s72
      %p79 = scmp.eq.s32.totalorder %s25, 1
      %p80 = por %p78, %p79
      %p81 = scmp.ne.s32.totalorder %s72, %s73
      %p82 = scmp.eq.s32.totalorder %s25, 0
      %p83 = por %p81, %p82
      %p84 = scmp.ne.s32.totalorder %s72, %s73
      %p85 = scmp.eq.s32.totalorder %s26, 1
      %p86 = por %p84, %p85
      %p88 = scmp.ne.s32.totalorder %s73, %s87
      %p89 = scmp.eq.s32.totalorder %s26, 0
      %p90 = por %p88, %p89
      %s92 = sadd.s32 %s91, 1
      %p95 = scmp.eq.s32.totalorder %s20, 1
      %p96 = scmp.ne.s32.totalorder %s91, %s93
      %p97 = scmp.eq.s32.totalorder %s20, 0
      %p98 = por %p96, %p97
      %p99 = scmp.ne.s32.totalorder %s91, %s93
      %p100 = scmp.eq.s32.totalorder %s25, 1
      %p101 = por %p99, %p100
      %p102 = scmp.ne.s32.totalorder %s93, %s94
      %p103 = scmp.eq.s32.totalorder %s25, 0
      %p104 = por %p102, %p103
      %p105 = scmp.ne.s32.totalorder %s93, %s94
      %p106 = scmp.eq.s32.totalorder %s26, 1
      %p107 = por %p105, %p106
      %p109 = scmp.ne.s32.totalorder %s94, %s108
      %p110 = scmp.eq.s32.totalorder %s26, 0
      %p111 = por %p109, %p110
      %s113 = sadd.s32 %s112, 1
      %p116 = scmp.eq.s32.totalorder %s20, 1
      %p117 = scmp.ne.s32.totalorder %s112, %s114
      %p118 = scmp.eq.s32.totalorder %s20, 0
      %p119 = por %p117, %p118
      %p120 = scmp.ne.s32.totalorder %s112, %s114
      %p121 = scmp.eq.s32.totalorder %s25, 1
      %p122 = por %p120, %p121
      %p123 = scmp.ne.s32.totalorder %s114, %s115
      %p124 = scmp.eq.s32.totalorder %s25, 0
      %p125 = por %p123, %p124
      %p126 = scmp.ne.s32.totalorder %s114, %s115
      %p127 = scmp.eq.s32.totalorder %s26, 1
      %p128 = por %p126, %p127
      %p130 = scmp.ne.s32.totalorder %s115, %s129
      %p131 = scmp.eq.s32.totalorder %s26, 0
      %p132 = por %p130, %p131
      %s134 = sadd.s32 %s133, 1
      %p137 = scmp.eq.s32.totalorder %s20, 1
      %p138 = scmp.ne.s32.totalorder %s133, %s135
      %p139 = scmp.eq.s32.totalorder %s20, 0
      %p140 = por %p138, %p139
      %p141 = scmp.ne.s32.totalorder %s133, %s135
      %p142 = scmp.eq.s32.totalorder %s25, 1
      %p143 = por %p141, %p142
      %p144 = scmp.ne.s32.totalorder %s135, %s136
      %p145 = scmp.eq.s32.totalorder %s25, 0
      %p146 = por %p144, %p145
      %p147 = scmp.ne.s32.totalorder %s135, %s136
      %p148 = scmp.eq.s32.totalorder %s26, 1
      %p149 = por %p147, %p148
      %p151 = scmp.ne.s32.totalorder %s136, %s150
      %p152 = scmp.eq.s32.totalorder %s26, 0
      %p153 = por %p151, %p152
      %s155 = sadd.s32 %s154, 1
      %p158 = scmp.eq.s32.totalorder %s20, 1
      %p159 = scmp.ne.s32.totalorder %s154, %s156
      %p160 = scmp.eq.s32.totalorder %s20, 0
      %p161 = por %p159, %p160
      %p162 = scmp.ne.s32.totalorder %s154, %s156
      %p163 = scmp.eq.s32.totalorder %s25, 1
      %p164 = por %p162, %p163
      %p165 = scmp.ne.s32.totalorder %s156, %s157
      %p166 = scmp.eq.s32.totalorder %s25, 0
      %p167 = por %p165, %p166
      %p168 = scmp.ne.s32.totalorder %s156, %s157
      %p169 = scmp.eq.s32.totalorder %s26, 1
      %p170 = por %p168, %p169
      %p172 = scmp.ne.s32.totalorder %s157, %s171
      %p173 = scmp.eq.s32.totalorder %s26, 0
      %p174 = por %p172, %p173
      %s175 = ssub.s32 %s20, %s27
      %p176 = scmp.eq.s32.totalorder %s175, 0
      %s178 = sadd.s32 %s177, 1
      %s179 = scalar_select %p176, %s177, %s178
      %p182 = pneg %p176
      %p183 = scmp.eq.s32.totalorder %s20, 1
      %p184 = por %p182, %p183
      %p185 = scmp.ne.s32.totalorder %s177, %s180
      %p186 = scmp.eq.s32.totalorder %s20, 0
      %p187 = por %p185, %p186
      %p188 = scmp.ne.s32.totalorder %s177, %s180
      %p189 = scmp.eq.s32.totalorder %s25, 1
      %p190 = por %p188, %p189
      %p191 = scmp.ne.s32.totalorder %s180, %s181
      %p192 = scmp.eq.s32.totalorder %s25, 0
      %p193 = por %p191, %p192
      %p194 = scmp.ne.s32.totalorder %s180, %s181
      %p195 = scmp.eq.s32.totalorder %s26, 1
      %p196 = por %p194, %p195
      %p198 = scmp.ne.s32.totalorder %s181, %s197
      %p199 = scmp.eq.s32.totalorder %s26, 0
      %p200 = por %p198, %p199
      %s201 = ssub.s32 %s20, %s27
      %p202 = scmp.eq.s32.totalorder %s201, 0
      %s204 = sadd.s32 %s203, 1
      %s205 = scalar_select %p202, %s203, %s204
      %p208 = pneg %p202
      %p209 = scmp.eq.s32.totalorder %s20, 1
      %p210 = por %p208, %p209
      %p211 = scmp.ne.s32.totalorder %s203, %s206
      %p212 = scmp.eq.s32.totalorder %s20, 0
      %p213 = por %p211, %p212
      %p214 = scmp.ne.s32.totalorder %s203, %s206
      %p215 = scmp.eq.s32.totalorder %s25, 1
      %p216 = por %p214, %p215
      %p217 = scmp.ne.s32.totalorder %s206, %s207
      %p218 = scmp.eq.s32.totalorder %s25, 0
      %p219 = por %p217, %p218
      %p220 = scmp.ne.s32.totalorder %s206, %s207
      %p221 = scmp.eq.s32.totalorder %s26, 1
      %p222 = por %p220, %p221
      %p224 = scmp.ne.s32.totalorder %s207, %s223
      %p225 = scmp.eq.s32.totalorder %s26, 0
      %p226 = por %p224, %p225
      %p227 = scmp.le.s32.totalorder 1, %s20
      %p228 = scmp.lt.s32.totalorder %s20, 3
      %p229 = pnand %p227, %p228
      %p230 = pneg %p229
      // Predicated region
      $region9: #{tpu_custom_call.1} parent=5 // pred_check
        _
      $region10: #{tpu_custom_call.1} parent=5 // pred_check_branch
        %232 = sbr.rel (%p229) target = $region12
      $region11: #{tpu_custom_call.1} parent=5 // pred_region
        %s233 = ssub.s32 %s20, 1
        // Predicated region
        $region13: #{tpu_custom_call.1} parent=11 // pred_check
          %p234 = pneg %p41
        $region14: #{tpu_custom_call.1} parent=11 // pred_check_branch
          %236 = sbr.rel (%p234) target = $region16
        $region15: #{tpu_custom_call.1} parent=11 // pred_region
          _
        $region16: #{tpu_custom_call.1} parent=11 // pred_fallthru
          _
        // Predicated region
        $region17: #{tpu_custom_call.1} parent=11 // pred_check
          %p237 = pneg %p62
        $region18: #{tpu_custom_call.1} parent=11 // pred_check_branch
          %239 = sbr.rel (%p237) target = $region20
        $region19: #{tpu_custom_call.1} parent=11 // pred_region
          _
        $region20: #{tpu_custom_call.1} parent=11 // pred_fallthru
          _
        // Predicated region
        $region21: #{tpu_custom_call.1} parent=11 // pred_check
          %p240 = pneg %p83
        $region22: #{tpu_custom_call.1} parent=11 // pred_check_branch
          %242 = sbr.rel (%p240) target = $region24
        $region23: #{tpu_custom_call.1} parent=11 // pred_region
          _
        $region24: #{tpu_custom_call.1} parent=11 // pred_fallthru
          _
        // Predicated region
        $region25: #{tpu_custom_call.1} parent=11 // pred_check
          %p243 = pneg %p104
        $region26: #{tpu_custom_call.1} parent=11 // pred_check_branch
          %245 = sbr.rel (%p243) target = $region28
        $region27: #{tpu_custom_call.1} parent=11 // pred_region
          _
        $region28: #{tpu_custom_call.1} parent=11 // pred_fallthru
          _
        // Predicated region
        $region29: #{tpu_custom_call.1} parent=11 // pred_check
          %p246 = pneg %p125
        $region30: #{tpu_custom_call.1} parent=11 // pred_check_branch
          %248 = sbr.rel (%p246) target = $region32
        $region31: #{tpu_custom_call.1} parent=11 // pred_region
          %s250 = ssub.s32 8192, 8192
          %251 = vsyncadd [#allocation4], %s250
          %s252 = sshll.u32 [#allocation3], 4
          %s253 = int_to_ptr.vmem [resolvable:$true] %s252
          %258 = dma.hbm_to_vmem [thread:$0]  %s4, 8192, %s253, [#allocation4], 256, 256, 16
        $region32: #{tpu_custom_call.1} parent=11 // pred_fallthru
          _
        // Predicated region
        $region33: #{tpu_custom_call.1} parent=11 // pred_check
          %p259 = pneg %p146
        $region34: #{tpu_custom_call.1} parent=11 // pred_check_branch
          %261 = sbr.rel (%p259) target = $region36
        $region35: #{tpu_custom_call.1} parent=11 // pred_region
          %s263 = ssub.s32 8192, 8192
          %264 = vsyncadd [#allocation7], %s263
          %s265 = sshll.u32 [#allocation6], 4
          %s266 = int_to_ptr.vmem [resolvable:$true] %s265
          %271 = dma.hbm_to_vmem [thread:$0]  %s5, 8192, %s266, [#allocation7], 256, 256, 16
        $region36: #{tpu_custom_call.1} parent=11 // pred_fallthru
          _
        // Predicated region
        $region37: #{tpu_custom_call.1} parent=11 // pred_check
          %p272 = pneg %p167
        $region38: #{tpu_custom_call.1} parent=11 // pred_check_branch
          %274 = sbr.rel (%p272) target = $region40
        $region39: #{tpu_custom_call.1} parent=11 // pred_region
          %s276 = ssub.s32 16384, 16384
          %277 = vsyncadd [#allocation7], %s276
          %s278 = sshll.u32 [#allocation8], 4
          %s279 = int_to_ptr.vmem [resolvable:$true] %s278
          %284 = dma.hbm_to_vmem [thread:$0]  %s6, 16384, %s279, [#allocation7], 256, 256, 16
        $region40: #{tpu_custom_call.1} parent=11 // pred_fallthru
          _
      $region12: #{tpu_custom_call.1} parent=5 // pred_fallthru
        _
      %p285 = scmp.lt.s32.totalorder %s20, 2
      // Predicated region
      $region41: #{tpu_custom_call.1} parent=5 // pred_check
        %p286 = pneg %p285
      $region42: #{tpu_custom_call.1} parent=5 // pred_check_branch
        %288 = sbr.rel (%p286) target = $region44
      $region43: #{tpu_custom_call.1} parent=5 // pred_region
        // Predicated region
        $region45: #{tpu_custom_call.1} parent=43 // pred_check
          %p289 = pneg %p187
        $region46: #{tpu_custom_call.1} parent=43 // pred_check_branch
          %291 = sbr.rel (%p289) target = $region48
        $region47: #{tpu_custom_call.1} parent=43 // pred_region
          %p292 = scmp.lt.s32.totalorder %s20, 1
          %s293 = scalar_select %p292, %s20, 1
          %s294 = smul.addr %s293, 2
          %s295 = smul.addr %s294, 4
          %s296 = scalar_lea.vmem %s7, %s295
        $region48: #{tpu_custom_call.1} parent=43 // pred_fallthru
          _
      $region44: #{tpu_custom_call.1} parent=5 // pred_fallthru
        _
      %p297 = scmp.le.s32.totalorder 1, %s20
      %p298 = scmp.lt.s32.totalorder %s20, 3
      %p299 = pnand %p297, %p298
      %p300 = pneg %p299
      // Predicated region
      $region49: #{tpu_custom_call.1} parent=5 // pred_check
        _
      $region50: #{tpu_custom_call.1} parent=5 // pred_check_branch
        %302 = sbr.rel (%p299) target = $region52
      $region51: #{tpu_custom_call.1} parent=5 // pred_region
        %s303 = ssub.s32 %s20, 1
        // Predicated region
        $region53: #{tpu_custom_call.1} parent=51 // pred_check
          %p304 = pneg %p125
        $region54: #{tpu_custom_call.1} parent=51 // pred_check_branch
          %306 = sbr.rel (%p304) target = $region56
        $region55: #{tpu_custom_call.1} parent=51 // pred_region
          %307 = dma.done [#allocation4], 8192
        $region56: #{tpu_custom_call.1} parent=51 // pred_fallthru
          _
        // Predicated region
        $region57: #{tpu_custom_call.1} parent=51 // pred_check
          %p308 = pneg %p146
        $region58: #{tpu_custom_call.1} parent=51 // pred_check_branch
          %310 = sbr.rel (%p308) target = $region60
        $region59: #{tpu_custom_call.1} parent=51 // pred_region
          %311 = dma.done [#allocation7], 8192
        $region60: #{tpu_custom_call.1} parent=51 // pred_fallthru
          _
        // Predicated region
        $region61: #{tpu_custom_call.1} parent=51 // pred_check
          %p312 = pneg %p167
        $region62: #{tpu_custom_call.1} parent=51 // pred_check_branch
          %314 = sbr.rel (%p312) target = $region64
        $region63: #{tpu_custom_call.1} parent=51 // pred_region
          %315 = dma.done [#allocation7], 16384
        $region64: #{tpu_custom_call.1} parent=51 // pred_fallthru
          _
        %p316 = pneg %p41
        %p317 = pneg %p38
        %p318 = pneg %p62
        %p319 = pneg %p59
        %p320 = pneg %p83
        %p321 = pneg %p80
        %p322 = pneg %p104
        %p323 = pneg %p101
        %p324 = pneg %p125
        %p325 = pneg %p122
        %p326 = pneg %p146
        %p327 = pneg %p143
        %p328 = pneg %p167
        %p329 = pneg %p164
        %p330 = scmp.lt.s32.totalorder %s25, 1
        %s331 = scalar_select %p330, %s25, 1
        %s332 = smul.addr %s331, 2
        %s333 = smul.addr %s332, 4
        %s334 = scalar_lea.vmem %s7, %s333
        %p335 = pneg %p193
        %p336 = pneg %p190
        %p337 = pneg %p219
        %p338 = pneg %p216
        %s339 = sand.u32 %s206, 1
        %s340 = scalar_lea.sflag [#allocation5], %s339
        %s341 = sand.u32 %s206, 1
        %s342 = smul.addr %s341, 8
        %s343 = scalar_lea.vmem [#allocation9], %s342
        %p344 = scmp.lt.s32.totalorder %s25, 1
        %s345 = scalar_select %p344, %s25, 1
        %s346 = smul.addr %s345, 2
        %s347 = smul.addr %s346, 4
        %s348 = scalar_lea.vmem %s7, %s347
        %v349 = vld [vmem:[%s1] sm:$0x3]
        %v350 = vld [vmem:[%s2] sm:$0xf]
        %v351 = vld [vmem:[%s3] sm:$0xf]
        %s352 = sld [smem:[#allocation2]]
        %v353 = vld [vmem:[%s348] sm:$0xff]
        %v354 = vld [vmem:[#allocation3] sm:$0xff]
        %v355 = vld [vmem:[#allocation3 + $0x8] sm:$0xff]
        %v356 = vld [vmem:[#allocation3 + $0x10] sm:$0xff]
        %v357 = vld [vmem:[#allocation3 + $0x18] sm:$0xff]
        %v358 = vld [vmem:[#allocation3 + $0x20] sm:$0xff]
        %v359 = vld [vmem:[#allocation3 + $0x28] sm:$0xff]
        %v360 = vld [vmem:[#allocation3 + $0x30] sm:$0xff]
        %v361 = vld [vmem:[#allocation3 + $0x38] sm:$0xff]
        %v362 = vld [vmem:[#allocation3 + $0x40] sm:$0xff]
        %v363 = vld [vmem:[#allocation3 + $0x48] sm:$0xff]
        %v364 = vld [vmem:[#allocation3 + $0x50] sm:$0xff]
        %v365 = vld [vmem:[#allocation3 + $0x58] sm:$0xff]
        %v366 = vld [vmem:[#allocation3 + $0x60] sm:$0xff]
        %v367 = vld [vmem:[#allocation3 + $0x68] sm:$0xff]
        %v368 = vld [vmem:[#allocation3 + $0x70] sm:$0xff]
        %v369 = vld [vmem:[#allocation3 + $0x78] sm:$0xff]
        %v370 = vld [vmem:[#allocation3 + $0x80] sm:$0xff]
        %v371 = vld [vmem:[#allocation3 + $0x88] sm:$0xff]
        %v372 = vld [vmem:[#allocation3 + $0x90] sm:$0xff]
        %v373 = vld [vmem:[#allocation3 + $0x98] sm:$0xff]
        %v374 = vld [vmem:[#allocation3 + $0xa0] sm:$0xff]
        %v375 = vld [vmem:[#allocation3 + $0xa8] sm:$0xff]
        %v376 = vld [vmem:[#allocation3 + $0xb0] sm:$0xff]
        %v377 = vld [vmem:[#allocation3 + $0xb8] sm:$0xff]
        %v378 = vld [vmem:[#allocation3 + $0xc0] sm:$0xff]
        %v379 = vld [vmem:[#allocation3 + $0xc8] sm:$0xff]
        %v380 = vld [vmem:[#allocation3 + $0xd0] sm:$0xff]
        %v381 = vld [vmem:[#allocation3 + $0xd8] sm:$0xff]
        %v382 = vld [vmem:[#allocation3 + $0xe0] sm:$0xff]
        %v383 = vld [vmem:[#allocation3 + $0xe8] sm:$0xff]
        %v384 = vld [vmem:[#allocation3 + $0xf0] sm:$0xff]
        %v385 = vld [vmem:[#allocation3 + $0xf8] sm:$0xff]
        %v386 = vld [vmem:[#allocation3 + $0x100] sm:$0xff]
        %v387 = vld [vmem:[#allocation3 + $0x108] sm:$0xff]
        %v388 = vld [vmem:[#allocation3 + $0x110] sm:$0xff]
        %v389 = vld [vmem:[#allocation3 + $0x118] sm:$0xff]
        %v390 = vld [vmem:[#allocation3 + $0x120] sm:$0xff]
        %v391 = vld [vmem:[#allocation3 + $0x128] sm:$0xff]
        %v392 = vld [vmem:[#allocation3 + $0x130] sm:$0xff]
        %v393 = vld [vmem:[#allocation3 + $0x138] sm:$0xff]
        %v394 = vld [vmem:[#allocation3 + $0x140] sm:$0xff]
        %v395 = vld [vmem:[#allocation3 + $0x148] sm:$0xff]
        %v396 = vld [vmem:[#allocation3 + $0x150] sm:$0xff]
        %v397 = vld [vmem:[#allocation3 + $0x158] sm:$0xff]
        %v398 = vld [vmem:[#allocation3 + $0x160] sm:$0xff]
        %v399 = vld [vmem:[#allocation3 + $0x168] sm:$0xff]
        %v400 = vld [vmem:[#allocation3 + $0x170] sm:$0xff]
        %v401 = vld [vmem:[#allocation3 + $0x178] sm:$0xff]
        %v402 = vld [vmem:[#allocation3 + $0x180] sm:$0xff]
        %v403 = vld [vmem:[#allocation3 + $0x188] sm:$0xff]
        %v404 = vld [vmem:[#allocation3 + $0x190] sm:$0xff]
        %v405 = vld [vmem:[#allocation3 + $0x198] sm:$0xff]
        %v406 = vld [vmem:[#allocation3 + $0x1a0] sm:$0xff]
        %v407 = vld [vmem:[#allocation3 + $0x1a8] sm:$0xff]
        %v408 = vld [vmem:[#allocation3 + $0x1b0] sm:$0xff]
        %v409 = vld [vmem:[#allocation3 + $0x1b8] sm:$0xff]
        %v410 = vld [vmem:[#allocation3 + $0x1c0] sm:$0xff]
        %v411 = vld [vmem:[#allocation3 + $0x1c8] sm:$0xff]
        %v412 = vld [vmem:[#allocation3 + $0x1d0] sm:$0xff]
        %v413 = vld [vmem:[#allocation3 + $0x1d8] sm:$0xff]
        %v414 = vld [vmem:[#allocation3 + $0x1e0] sm:$0xff]
        %v415 = vld [vmem:[#allocation3 + $0x1e8] sm:$0xff]
        %v416 = vld [vmem:[#allocation3 + $0x1f0] sm:$0xff]
        %v417 = vld [vmem:[#allocation3 + $0x1f8] sm:$0xff]
        %v419 = vcombine.high %v353, %v353
        %421 = vmatprep.subr.mxu0 %v385
        %422 = vmatpush1.msra.mxu0 %v384
        %423 = vmatprep.subr.mxu0 %v383
        %424 = vmatpush1.msra.mxu0 %v382
        %425 = vmatprep.subr.mxu0 %v381
        %426 = vmatpush1.msra.mxu0 %v380
        %427 = vmatprep.subr.mxu0 %v379
        %428 = vmatpush1.msra.mxu0 %v378
        %429 = vmatprep.subr.mxu0 %v377
        %430 = vmatpush1.msra.mxu0 %v376
        %431 = vmatprep.subr.mxu0 %v375
        %432 = vmatpush1.msra.mxu0 %v374
        %433 = vmatprep.subr.mxu0 %v373
        %434 = vmatpush1.msra.mxu0 %v372
        %435 = vmatprep.subr.mxu0 %v371
        %436 = vmatpush1.msra.mxu0 %v370
        %437 = vmatprep.subr.mxu0 %v369
        %438 = vmatpush1.msra.mxu0 %v368
        %439 = vmatprep.subr.mxu0 %v367
        %440 = vmatpush1.msra.mxu0 %v366
        %441 = vmatprep.subr.mxu0 %v365
        %442 = vmatpush1.msra.mxu0 %v364
        %443 = vmatprep.subr.mxu0 %v363
        %444 = vmatpush1.msra.mxu0 %v362
        %445 = vmatprep.subr.mxu0 %v361
        %446 = vmatpush1.msra.mxu0 %v360
        %447 = vmatprep.subr.mxu0 %v359
        %448 = vmatpush1.msra.mxu0 %v358
        %449 = vmatprep.subr.mxu0 %v357
        %450 = vmatpush1.msra.mxu0 %v356
        %451 = vmatprep.subr.mxu0 %v355
        %452 = vmatpush1.msra.mxu0 %v354
        %453 = vmatprep.subr.mxu0 %v417
        %454 = vmatpush2.msra.mxu0 %v416
        %455 = vmatprep.subr.mxu0 %v415
        %456 = vmatpush2.msra.mxu0 %v414
        %457 = vmatprep.subr.mxu0 %v413
        %458 = vmatpush2.msra.mxu0 %v412
        %459 = vmatprep.subr.mxu0 %v411
        %460 = vmatpush2.msra.mxu0 %v410
        %461 = vmatprep.subr.mxu0 %v409
        %462 = vmatpush2.msra.mxu0 %v408
        %463 = vmatprep.subr.mxu0 %v407
        %464 = vmatpush2.msra.mxu0 %v406
        %465 = vmatprep.subr.mxu0 %v405
        %466 = vmatpush2.msra.mxu0 %v404
        %467 = vmatprep.subr.mxu0 %v403
        %468 = vmatpush2.msra.mxu0 %v402
        %469 = vmatprep.subr.mxu0 %v401
        %470 = vmatpush2.msra.mxu0 %v400
        %471 = vmatprep.subr.mxu0 %v399
        %472 = vmatpush2.msra.mxu0 %v398
        %473 = vmatprep.subr.mxu0 %v397
        %474 = vmatpush2.msra.mxu0 %v396
        %475 = vmatprep.subr.mxu0 %v395
        %476 = vmatpush2.msra.mxu0 %v394
        %477 = vmatprep.subr.mxu0 %v393
        %478 = vmatpush2.msra.mxu0 %v392
        %479 = vmatprep.subr.mxu0 %v391
        %480 = vmatpush2.msra.mxu0 %v390
        %481 = vmatprep.subr.mxu0 %v389
        %482 = vmatpush2.msra.mxu0 %v388
        %483 = vmatprep.subr.mxu0 %v387
        %484 = vmatpush2.msra.mxu0 %v386
        %485 = vmatprep.mubr.f32.mxu0 %v419
        %486 = vmatmul.mubr.f32.gmra.mxu0 %v353
        %v487 = vpop.f32.mrf.mxu0
        %v488 = vadd.f32 0.0, %v487
        %v489 = vpop.f32.mrf.mxu0
        %v490 = vadd.f32 0.0, %v489
        %491 = vdwg.mxu0
        %v492 = vld [vmem:[#allocation6] sm:$0xff]
        %v493 = vld [vmem:[#allocation6 + $0x8] sm:$0xff]
        %v494 = vld [vmem:[#allocation6 + $0x10] sm:$0xff]
        %v495 = vld [vmem:[#allocation6 + $0x18] sm:$0xff]
        %v496 = vld [vmem:[#allocation6 + $0x20] sm:$0xff]
        %v497 = vld [vmem:[#allocation6 + $0x28] sm:$0xff]
        %v498 = vld [vmem:[#allocation6 + $0x30] sm:$0xff]
        %v499 = vld [vmem:[#allocation6 + $0x38] sm:$0xff]
        %v500 = vld [vmem:[#allocation6 + $0x40] sm:$0xff]
        %v501 = vld [vmem:[#allocation6 + $0x48] sm:$0xff]
        %v502 = vld [vmem:[#allocation6 + $0x50] sm:$0xff]
        %v503 = vld [vmem:[#allocation6 + $0x58] sm:$0xff]
        %v504 = vld [vmem:[#allocation6 + $0x60] sm:$0xff]
        %v505 = vld [vmem:[#allocation6 + $0x68] sm:$0xff]
        %v506 = vld [vmem:[#allocation6 + $0x70] sm:$0xff]
        %v507 = vld [vmem:[#allocation6 + $0x78] sm:$0xff]
        %v508 = vld [vmem:[#allocation6 + $0x80] sm:$0xff]
        %v509 = vld [vmem:[#allocation6 + $0x88] sm:$0xff]
        %v510 = vld [vmem:[#allocation6 + $0x90] sm:$0xff]
        %v511 = vld [vmem:[#allocation6 + $0x98] sm:$0xff]
        %v512 = vld [vmem:[#allocation6 + $0xa0] sm:$0xff]
        %v513 = vld [vmem:[#allocation6 + $0xa8] sm:$0xff]
        %v514 = vld [vmem:[#allocation6 + $0xb0] sm:$0xff]
        %v515 = vld [vmem:[#allocation6 + $0xb8] sm:$0xff]
        %v516 = vld [vmem:[#allocation6 + $0xc0] sm:$0xff]
        %v517 = vld [vmem:[#allocation6 + $0xc8] sm:$0xff]
        %v518 = vld [vmem:[#allocation6 + $0xd0] sm:$0xff]
        %v519 = vld [vmem:[#allocation6 + $0xd8] sm:$0xff]
        %v520 = vld [vmem:[#allocation6 + $0xe0] sm:$0xff]
        %v521 = vld [vmem:[#allocation6 + $0xe8] sm:$0xff]
        %v522 = vld [vmem:[#allocation6 + $0xf0] sm:$0xff]
        %v523 = vld [vmem:[#allocation6 + $0xf8] sm:$0xff]
        %v524 = vld [vmem:[#allocation6 + $0x100] sm:$0xff]
        %v525 = vld [vmem:[#allocation6 + $0x108] sm:$0xff]
        %v526 = vld [vmem:[#allocation6 + $0x110] sm:$0xff]
        %v527 = vld [vmem:[#allocation6 + $0x118] sm:$0xff]
        %v528 = vld [vmem:[#allocation6 + $0x120] sm:$0xff]
        %v529 = vld [vmem:[#allocation6 + $0x128] sm:$0xff]
        %v530 = vld [vmem:[#allocation6 + $0x130] sm:$0xff]
        %v531 = vld [vmem:[#allocation6 + $0x138] sm:$0xff]
        %v532 = vld [vmem:[#allocation6 + $0x140] sm:$0xff]
        %v533 = vld [vmem:[#allocation6 + $0x148] sm:$0xff]
        %v534 = vld [vmem:[#allocation6 + $0x150] sm:$0xff]
        %v535 = vld [vmem:[#allocation6 + $0x158] sm:$0xff]
        %v536 = vld [vmem:[#allocation6 + $0x160] sm:$0xff]
        %v537 = vld [vmem:[#allocation6 + $0x168] sm:$0xff]
        %v538 = vld [vmem:[#allocation6 + $0x170] sm:$0xff]
        %v539 = vld [vmem:[#allocation6 + $0x178] sm:$0xff]
        %v540 = vld [vmem:[#allocation6 + $0x180] sm:$0xff]
        %v541 = vld [vmem:[#allocation6 + $0x188] sm:$0xff]
        %v542 = vld [vmem:[#allocation6 + $0x190] sm:$0xff]
        %v543 = vld [vmem:[#allocation6 + $0x198] sm:$0xff]
        %v544 = vld [vmem:[#allocation6 + $0x1a0] sm:$0xff]
        %v545 = vld [vmem:[#allocation6 + $0x1a8] sm:$0xff]
        %v546 = vld [vmem:[#allocation6 + $0x1b0] sm:$0xff]
        %v547 = vld [vmem:[#allocation6 + $0x1b8] sm:$0xff]
        %v548 = vld [vmem:[#allocation6 + $0x1c0] sm:$0xff]
        %v549 = vld [vmem:[#allocation6 + $0x1c8] sm:$0xff]
        %v550 = vld [vmem:[#allocation6 + $0x1d0] sm:$0xff]
        %v551 = vld [vmem:[#allocation6 + $0x1d8] sm:$0xff]
        %v552 = vld [vmem:[#allocation6 + $0x1e0] sm:$0xff]
        %v553 = vld [vmem:[#allocation6 + $0x1e8] sm:$0xff]
        %v554 = vld [vmem:[#allocation6 + $0x1f0] sm:$0xff]
        %v555 = vld [vmem:[#allocation6 + $0x1f8] sm:$0xff]
        %556 = vmatprep.subr.mxu0 %v523
        %557 = vmatpush1.msra.mxu0 %v522
        %558 = vmatprep.subr.mxu0 %v521
        %559 = vmatpush1.msra.mxu0 %v520
        %560 = vmatprep.subr.mxu0 %v519
        %561 = vmatpush1.msra.mxu0 %v518
        %562 = vmatprep.subr.mxu0 %v517
        %563 = vmatpush1.msra.mxu0 %v516
        %564 = vmatprep.subr.mxu0 %v515
        %565 = vmatpush1.msra.mxu0 %v514
        %566 = vmatprep.subr.mxu0 %v513
        %567 = vmatpush1.msra.mxu0 %v512
        %568 = vmatprep.subr.mxu0 %v511
        %569 = vmatpush1.msra.mxu0 %v510
        %570 = vmatprep.subr.mxu0 %v509
        %571 = vmatpush1.msra.mxu0 %v508
        %572 = vmatprep.subr.mxu0 %v507
        %573 = vmatpush1.msra.mxu0 %v506
        %574 = vmatprep.subr.mxu0 %v505
        %575 = vmatpush1.msra.mxu0 %v504
        %576 = vmatprep.subr.mxu0 %v503
        %577 = vmatpush1.msra.mxu0 %v502
        %578 = vmatprep.subr.mxu0 %v501
        %579 = vmatpush1.msra.mxu0 %v500
        %580 = vmatprep.subr.mxu0 %v499
        %581 = vmatpush1.msra.mxu0 %v498
        %582 = vmatprep.subr.mxu0 %v497
        %583 = vmatpush1.msra.mxu0 %v496
        %584 = vmatprep.subr.mxu0 %v495
        %585 = vmatpush1.msra.mxu0 %v494
        %586 = vmatprep.subr.mxu0 %v493
        %587 = vmatpush1.msra.mxu0 %v492
        %588 = vmatprep.subr.mxu0 %v555
        %589 = vmatpush2.msra.mxu0 %v554
        %590 = vmatprep.subr.mxu0 %v553
        %591 = vmatpush2.msra.mxu0 %v552
        %592 = vmatprep.subr.mxu0 %v551
        %593 = vmatpush2.msra.mxu0 %v550
        %594 = vmatprep.subr.mxu0 %v549
        %595 = vmatpush2.msra.mxu0 %v548
        %596 = vmatprep.subr.mxu0 %v547
        %597 = vmatpush2.msra.mxu0 %v546
        %598 = vmatprep.subr.mxu0 %v545
        %599 = vmatpush2.msra.mxu0 %v544
        %600 = vmatprep.subr.mxu0 %v543
        %601 = vmatpush2.msra.mxu0 %v542
        %602 = vmatprep.subr.mxu0 %v541
        %603 = vmatpush2.msra.mxu0 %v540
        %604 = vmatprep.subr.mxu0 %v539
        %605 = vmatpush2.msra.mxu0 %v538
        %606 = vmatprep.subr.mxu0 %v537
        %607 = vmatpush2.msra.mxu0 %v536
        %608 = vmatprep.subr.mxu0 %v535
        %609 = vmatpush2.msra.mxu0 %v534
        %610 = vmatprep.subr.mxu0 %v533
        %611 = vmatpush2.msra.mxu0 %v532
        %612 = vmatprep.subr.mxu0 %v531
        %613 = vmatpush2.msra.mxu0 %v530
        %614 = vmatprep.subr.mxu0 %v529
        %615 = vmatpush2.msra.mxu0 %v528
        %616 = vmatprep.subr.mxu0 %v527
        %617 = vmatpush2.msra.mxu0 %v526
        %618 = vmatprep.subr.mxu0 %v525
        %619 = vmatpush2.msra.mxu0 %v524
        %620 = vmatprep.mubr.f32.mxu0 %v419
        %621 = vmatmul.mubr.f32.gmra.mxu0 %v353
        %v622 = vpop.f32.mrf.mxu0
        %v623 = vadd.f32 0.0, %v622
        %v624 = vpop.f32.mrf.mxu0
        %v625 = vadd.f32 0.0, %v624
        %626 = vdwg.mxu0
        %v627 = vlaneseq
        %v628 = vshrl.u32 %v627, 7
        %v629 = vsub.s32 0, %v628
        %v630 = vrot.slane %v349, %v629
        %632 = vbcast.lane.b32.xlu0 %v630, 256
        %v633 = vpop.permute.xlu0 %632
        %v634 = vlaneseq
        %v635 = vshrl.u32 %v634, 7
        %v636 = vsub.s32 1, %v635
        %v637 = vrot.slane %v349, %v636
        %639 = vbcast.lane.b32.xlu0 %v637, 256
        %v640 = vpop.permute.xlu0 %639
        %v641 = vmul.f32 %v633, %v488
        %v642 = vmul.f32 %v633, %v490
        %v643 = vmul.f32 %v640, %v488
        %v644 = vmul.f32 %v640, %v490
        %vm645 = vcmask 1043456
        %v646 = vsel %vm645, %v641, 0.0
        %v647 = vrot.slane %v646, 4
        %v648 = vadd.f32 %v646, %v647
        %v649 = vrot.slane %v648, 2
        %v650 = vadd.f32 %v648, %v649
        %v651 = vrot.slane %v650, 1
        %v652 = vadd.f32 %v650, %v651
        %v653 = vsel %vm645, %v642, 0.0
        %v654 = vrot.slane %v653, 4
        %v655 = vadd.f32 %v653, %v654
        %v656 = vrot.slane %v655, 2
        %v657 = vadd.f32 %v655, %v656
        %v658 = vrot.slane %v657, 1
        %v659 = vadd.f32 %v657, %v658
        %v660 = vsel %vm645, %v643, 0.0
        %v661 = vrot.slane %v660, 4
        %v662 = vadd.f32 %v660, %v661
        %v663 = vrot.slane %v662, 2
        %v664 = vadd.f32 %v662, %v663
        %v665 = vrot.slane %v664, 1
        %v666 = vadd.f32 %v664, %v665
        %v667 = vsel %vm645, %v644, 0.0
        %v668 = vrot.slane %v667, 4
        %v669 = vadd.f32 %v667, %v668
        %v670 = vrot.slane %v669, 2
        %v671 = vadd.f32 %v669, %v670
        %v672 = vrot.slane %v671, 1
        %v673 = vadd.f32 %v671, %v672
        %v674 = vmax.f32 %v652, 0.0
        %v675 = vmax.f32 %v659, 0.0
        %v676 = vmax.f32 %v666, 0.0
        %v677 = vmax.f32 %v673, 0.0
        %v678 = vlaneseq
        %v679 = vshrl.u32 %v678, 7
        %v680 = vsub.s32 0, %v679
        %v681 = vrot.slane %v350, %v680
        %683 = vbcast.lane.b32.xlu0 %v681, 256
        %v684 = vpop.permute.xlu0 %683
        %v685 = vlaneseq
        %v686 = vshrl.u32 %v685, 7
        %v687 = vsub.s32 1, %v686
        %v688 = vrot.slane %v350, %v687
        %690 = vbcast.lane.b32.xlu0 %v688, 256
        %v691 = vpop.permute.xlu0 %690
        %v692 = vlaneseq
        %v693 = vshrl.u32 %v692, 7
        %v694 = vsub.s32 2, %v693
        %v695 = vrot.slane %v350, %v694
        %697 = vbcast.lane.b32.xlu0 %v695, 256
        %v698 = vpop.permute.xlu0 %697
        %v699 = vlaneseq
        %v700 = vshrl.u32 %v699, 7
        %v701 = vsub.s32 3, %v700
        %v702 = vrot.slane %v350, %v701
        %704 = vbcast.lane.b32.xlu0 %v702, 256
        %v705 = vpop.permute.xlu0 %704
        %vm710 = vcmask 1041409
        %v711 = vsel %vm710, %v676, %v674
        %v712 = vsel %vm710, %v677, %v675
        %v715 = vmul.f32 %v684, %v711
        %v716 = vmul.f32 %v684, %v712
        %v717 = vmul.f32 %v691, %v711
        %v718 = vmul.f32 %v691, %v712
        %v719 = vmul.f32 %v698, %v711
        %v720 = vmul.f32 %v698, %v712
        %v721 = vmul.f32 %v705, %v711
        %v722 = vmul.f32 %v705, %v712
        %vm723 = vcmask 1041408
        %v724 = vsel %vm723, %v715, 0.0
        %v725 = vrot.slane %v724, 4
        %v726 = vadd.f32 %v724, %v725
        %v727 = vrot.slane %v726, 2
        %v728 = vadd.f32 %v726, %v727
        %v729 = vrot.slane %v728, 1
        %v730 = vadd.f32 %v728, %v729
        %v731 = vsel %vm723, %v716, 0.0
        %v732 = vrot.slane %v731, 4
        %v733 = vadd.f32 %v731, %v732
        %v734 = vrot.slane %v733, 2
        %v735 = vadd.f32 %v733, %v734
        %v736 = vrot.slane %v735, 1
        %v737 = vadd.f32 %v735, %v736
        %v738 = vsel %vm723, %v717, 0.0
        %v739 = vrot.slane %v738, 4
        %v740 = vadd.f32 %v738, %v739
        %v741 = vrot.slane %v740, 2
        %v742 = vadd.f32 %v740, %v741
        %v743 = vrot.slane %v742, 1
        %v744 = vadd.f32 %v742, %v743
        %v745 = vsel %vm723, %v718, 0.0
        %v746 = vrot.slane %v745, 4
        %v747 = vadd.f32 %v745, %v746
        %v748 = vrot.slane %v747, 2
        %v749 = vadd.f32 %v747, %v748
        %v750 = vrot.slane %v749, 1
        %v751 = vadd.f32 %v749, %v750
        %v752 = vsel %vm723, %v719, 0.0
        %v753 = vrot.slane %v752, 4
        %v754 = vadd.f32 %v752, %v753
        %v755 = vrot.slane %v754, 2
        %v756 = vadd.f32 %v754, %v755
        %v757 = vrot.slane %v756, 1
        %v758 = vadd.f32 %v756, %v757
        %v759 = vsel %vm723, %v720, 0.0
        %v760 = vrot.slane %v759, 4
        %v761 = vadd.f32 %v759, %v760
        %v762 = vrot.slane %v761, 2
        %v763 = vadd.f32 %v761, %v762
        %v764 = vrot.slane %v763, 1
        %v765 = vadd.f32 %v763, %v764
        %v766 = vsel %vm723, %v721, 0.0
        %v767 = vrot.slane %v766, 4
        %v768 = vadd.f32 %v766, %v767
        %v769 = vrot.slane %v768, 2
        %v770 = vadd.f32 %v768, %v769
        %v771 = vrot.slane %v770, 1
        %v772 = vadd.f32 %v770, %v771
        %v773 = vsel %vm723, %v722, 0.0
        %v774 = vrot.slane %v773, 4
        %v775 = vadd.f32 %v773, %v774
        %v776 = vrot.slane %v775, 2
        %v777 = vadd.f32 %v775, %v776
        %v778 = vrot.slane %v777, 1
        %v779 = vadd.f32 %v777, %v778
        %v780 = vxor.u32 %v730, 2147483648
        %v781 = vxor.u32 %v737, 2147483648
        %v782 = vxor.u32 %v744, 2147483648
        %v783 = vxor.u32 %v751, 2147483648
        %v784 = vxor.u32 %v758, 2147483648
        %v785 = vxor.u32 %v765, 2147483648
        %v786 = vxor.u32 %v772, 2147483648
        %v787 = vxor.u32 %v779, 2147483648
        %v788 = vmul.f32 %v780, 1.442695
        %v789 = vpow.pop %v788
        %v790 = vmul.f32 %v781, 1.442695
        %v791 = vpow.pop %v790
        %v792 = vmul.f32 %v782, 1.442695
        %v793 = vpow.pop %v792
        %v794 = vmul.f32 %v783, 1.442695
        %v795 = vpow.pop %v794
        %v796 = vmul.f32 %v784, 1.442695
        %v797 = vpow.pop %v796
        %v798 = vmul.f32 %v785, 1.442695
        %v799 = vpow.pop %v798
        %v800 = vmul.f32 %v786, 1.442695
        %v801 = vpow.pop %v800
        %v802 = vmul.f32 %v787, 1.442695
        %v803 = vpow.pop %v802
        %v804 = vadd.f32 %v789, 1.0
        %v805 = vadd.f32 %v791, 1.0
        %v806 = vadd.f32 %v793, 1.0
        %v807 = vadd.f32 %v795, 1.0
        %v808 = vadd.f32 %v797, 1.0
        %v809 = vadd.f32 %v799, 1.0
        %v810 = vadd.f32 %v801, 1.0
        %v811 = vadd.f32 %v803, 1.0
        %v812 = vrcp.pop %v804
        %v813 = vmul.f32 1.0, %v812
        %v814 = vrcp.pop %v805
        %v815 = vmul.f32 1.0, %v814
        %v816 = vrcp.pop %v806
        %v817 = vmul.f32 1.0, %v816
        %v818 = vrcp.pop %v807
        %v819 = vmul.f32 1.0, %v818
        %v820 = vrcp.pop %v808
        %v821 = vmul.f32 1.0, %v820
        %v822 = vrcp.pop %v809
        %v823 = vmul.f32 1.0, %v822
        %v824 = vrcp.pop %v810
        %v825 = vmul.f32 1.0, %v824
        %v826 = vrcp.pop %v811
        %v827 = vmul.f32 1.0, %v826
        %v828 = vmul.f32 %v633, %v623
        %v829 = vmul.f32 %v633, %v625
        %v830 = vmul.f32 %v640, %v623
        %v831 = vmul.f32 %v640, %v625
        %v832 = vsel %vm645, %v828, 0.0
        %v833 = vrot.slane %v832, 4
        %v834 = vadd.f32 %v832, %v833
        %v835 = vrot.slane %v834, 2
        %v836 = vadd.f32 %v834, %v835
        %v837 = vrot.slane %v836, 1
        %v838 = vadd.f32 %v836, %v837
        %v839 = vsel %vm645, %v829, 0.0
        %v840 = vrot.slane %v839, 4
        %v841 = vadd.f32 %v839, %v840
        %v842 = vrot.slane %v841, 2
        %v843 = vadd.f32 %v841, %v842
        %v844 = vrot.slane %v843, 1
        %v845 = vadd.f32 %v843, %v844
        %v846 = vsel %vm645, %v830, 0.0
        %v847 = vrot.slane %v846, 4
        %v848 = vadd.f32 %v846, %v847
        %v849 = vrot.slane %v848, 2
        %v850 = vadd.f32 %v848, %v849
        %v851 = vrot.slane %v850, 1
        %v852 = vadd.f32 %v850, %v851
        %v853 = vsel %vm645, %v831, 0.0
        %v854 = vrot.slane %v853, 4
        %v855 = vadd.f32 %v853, %v854
        %v856 = vrot.slane %v855, 2
        %v857 = vadd.f32 %v855, %v856
        %v858 = vrot.slane %v857, 1
        %v859 = vadd.f32 %v857, %v858
        %v860 = vmax.f32 %v838, 0.0
        %v861 = vmax.f32 %v845, 0.0
        %v862 = vmax.f32 %v852, 0.0
        %v863 = vmax.f32 %v859, 0.0
        %v864 = vlaneseq
        %v865 = vshrl.u32 %v864, 7
        %v866 = vsub.s32 0, %v865
        %v867 = vrot.slane %v351, %v866
        %869 = vbcast.lane.b32.xlu0 %v867, 256
        %v870 = vpop.permute.xlu0 %869
        %v871 = vlaneseq
        %v872 = vshrl.u32 %v871, 7
        %v873 = vsub.s32 1, %v872
        %v874 = vrot.slane %v351, %v873
        %876 = vbcast.lane.b32.xlu0 %v874, 256
        %v877 = vpop.permute.xlu0 %876
        %v878 = vlaneseq
        %v879 = vshrl.u32 %v878, 7
        %v880 = vsub.s32 2, %v879
        %v881 = vrot.slane %v351, %v880
        %883 = vbcast.lane.b32.xlu0 %v881, 256
        %v884 = vpop.permute.xlu0 %883
        %v885 = vlaneseq
        %v886 = vshrl.u32 %v885, 7
        %v887 = vsub.s32 3, %v886
        %v888 = vrot.slane %v351, %v887
        %890 = vbcast.lane.b32.xlu0 %v888, 256
        %v891 = vpop.permute.xlu0 %890
        %v896 = vsel %vm710, %v862, %v860
        %v897 = vsel %vm710, %v863, %v861
        %v900 = vmul.f32 %v870, %v896
        %v901 = vmul.f32 %v870, %v897
        %v902 = vmul.f32 %v877, %v896
        %v903 = vmul.f32 %v877, %v897
        %v904 = vmul.f32 %v884, %v896
        %v905 = vmul.f32 %v884, %v897
        %v906 = vmul.f32 %v891, %v896
        %v907 = vmul.f32 %v891, %v897
        %v908 = vsel %vm723, %v900, 0.0
        %v909 = vrot.slane %v908, 4
        %v910 = vadd.f32 %v908, %v909
        %v911 = vrot.slane %v910, 2
        %v912 = vadd.f32 %v910, %v911
        %v913 = vrot.slane %v912, 1
        %v914 = vadd.f32 %v912, %v913
        %v915 = vsel %vm723, %v901, 0.0
        %v916 = vrot.slane %v915, 4
        %v917 = vadd.f32 %v915, %v916
        %v918 = vrot.slane %v917, 2
        %v919 = vadd.f32 %v917, %v918
        %v920 = vrot.slane %v919, 1
        %v921 = vadd.f32 %v919, %v920
        %v922 = vsel %vm723, %v902, 0.0
        %v923 = vrot.slane %v922, 4
        %v924 = vadd.f32 %v922, %v923
        %v925 = vrot.slane %v924, 2
        %v926 = vadd.f32 %v924, %v925
        %v927 = vrot.slane %v926, 1
        %v928 = vadd.f32 %v926, %v927
        %v929 = vsel %vm723, %v903, 0.0
        %v930 = vrot.slane %v929, 4
        %v931 = vadd.f32 %v929, %v930
        %v932 = vrot.slane %v931, 2
        %v933 = vadd.f32 %v931, %v932
        %v934 = vrot.slane %v933, 1
        %v935 = vadd.f32 %v933, %v934
        %v936 = vsel %vm723, %v904, 0.0
        %v937 = vrot.slane %v936, 4
        %v938 = vadd.f32 %v936, %v937
        %v939 = vrot.slane %v938, 2
        %v940 = vadd.f32 %v938, %v939
        %v941 = vrot.slane %v940, 1
        %v942 = vadd.f32 %v940, %v941
        %v943 = vsel %vm723, %v905, 0.0
        %v944 = vrot.slane %v943, 4
        %v945 = vadd.f32 %v943, %v944
        %v946 = vrot.slane %v945, 2
        %v947 = vadd.f32 %v945, %v946
        %v948 = vrot.slane %v947, 1
        %v949 = vadd.f32 %v947, %v948
        %v950 = vsel %vm723, %v906, 0.0
        %v951 = vrot.slane %v950, 4
        %v952 = vadd.f32 %v950, %v951
        %v953 = vrot.slane %v952, 2
        %v954 = vadd.f32 %v952, %v953
        %v955 = vrot.slane %v954, 1
        %v956 = vadd.f32 %v954, %v955
        %v957 = vsel %vm723, %v907, 0.0
        %v958 = vrot.slane %v957, 4
        %v959 = vadd.f32 %v957, %v958
        %v960 = vrot.slane %v959, 2
        %v961 = vadd.f32 %v959, %v960
        %v962 = vrot.slane %v961, 1
        %v963 = vadd.f32 %v961, %v962
        %v964 = vxor.u32 %v914, 2147483648
        %v965 = vxor.u32 %v921, 2147483648
        %v966 = vxor.u32 %v928, 2147483648
        %v967 = vxor.u32 %v935, 2147483648
        %v968 = vxor.u32 %v942, 2147483648
        %v969 = vxor.u32 %v949, 2147483648
        %v970 = vxor.u32 %v956, 2147483648
        %v971 = vxor.u32 %v963, 2147483648
        %v972 = vmul.f32 %v964, 1.442695
        %v973 = vpow.pop %v972
        %v974 = vmul.f32 %v965, 1.442695
        %v975 = vpow.pop %v974
        %v976 = vmul.f32 %v966, 1.442695
        %v977 = vpow.pop %v976
        %v978 = vmul.f32 %v967, 1.442695
        %v979 = vpow.pop %v978
        %v980 = vmul.f32 %v968, 1.442695
        %v981 = vpow.pop %v980
        %v982 = vmul.f32 %v969, 1.442695
        %v983 = vpow.pop %v982
        %v984 = vmul.f32 %v970, 1.442695
        %v985 = vpow.pop %v984
        %v986 = vmul.f32 %v971, 1.442695
        %v987 = vpow.pop %v986
        %v988 = vadd.f32 %v973, 1.0
        %v989 = vadd.f32 %v975, 1.0
        %v990 = vadd.f32 %v977, 1.0
        %v991 = vadd.f32 %v979, 1.0
        %v992 = vadd.f32 %v981, 1.0
        %v993 = vadd.f32 %v983, 1.0
        %v994 = vadd.f32 %v985, 1.0
        %v995 = vadd.f32 %v987, 1.0
        %v996 = vrcp.pop %v988
        %v997 = vmul.f32 1.0, %v996
        %v998 = vrcp.pop %v989
        %v999 = vmul.f32 1.0, %v998
        %v1000 = vrcp.pop %v990
        %v1001 = vmul.f32 1.0, %v1000
        %v1002 = vrcp.pop %v991
        %v1003 = vmul.f32 1.0, %v1002
        %v1004 = vrcp.pop %v992
        %v1005 = vmul.f32 1.0, %v1004
        %v1006 = vrcp.pop %v993
        %v1007 = vmul.f32 1.0, %v1006
        %v1008 = vrcp.pop %v994
        %v1009 = vmul.f32 1.0, %v1008
        %v1010 = vrcp.pop %v995
        %v1011 = vmul.f32 1.0, %v1010
        %v1020 = vcombine.low %v813, %v815
        %v1021 = vcombine.low %v817, %v819
        %v1022 = vcombine.low %v821, %v823
        %v1023 = vcombine.low %v825, %v827
        %v1024 = vrot.slane %v1021, 7
        %v1025 = vsel %vm710, %v1024, %v1020
        %vm1026 = vcmask 1045509
        %v1027 = vsel %vm1026, %v1024, %v1025
        %v1028 = vrot.slane %v1022, 6
        %vm1029 = vcmask 1042434
        %v1030 = vsel %vm1029, %v1028, %v1027
        %vm1031 = vcmask 1046534
        %v1032 = vsel %vm1031, %v1028, %v1030
        %v1033 = vrot.slane %v1023, 5
        %vm1034 = vcmask 1043459
        %v1035 = vsel %vm1034, %v1033, %v1032
        %vm1036 = vcmask 1047559
        %v1037 = vsel %vm1036, %v1033, %v1035
        %v1039 = vmul.f32 %v353, %v1037
        %v1048 = vcombine.low %v997, %v999
        %v1049 = vcombine.low %v1001, %v1003
        %v1050 = vcombine.low %v1005, %v1007
        %v1051 = vcombine.low %v1009, %v1011
        %v1052 = vrot.slane %v1049, 7
        %v1053 = vsel %vm710, %v1052, %v1048
        %v1054 = vsel %vm1026, %v1052, %v1053
        %v1055 = vrot.slane %v1050, 6
        %v1056 = vsel %vm1029, %v1055, %v1054
        %v1057 = vsel %vm1031, %v1055, %v1056
        %v1058 = vrot.slane %v1051, 5
        %v1059 = vsel %vm1034, %v1058, %v1057
        %v1060 = vsel %vm1036, %v1058, %v1059
        %v1062 = vmul.f32 %v1039, %v1060
        %v1064 = vcombine.high %v1062, %v1062
        %v1066 = vsel %vm645, %v1062, -inf
        %v1067 = vrot.slane %v1066, 4
        %v1068 = vmax.f32 %v1066, %v1067
        %v1069 = vrot.slane %v1068, 2
        %v1070 = vmax.f32 %v1068, %v1069
        %v1071 = vrot.slane %v1070, 1
        %v1072 = vmax.f32 %v1070, %v1071
        %v1073 = vsel %vm645, %v1064, -inf
        %v1074 = vrot.slane %v1073, 4
        %v1075 = vmax.f32 %v1073, %v1074
        %v1076 = vrot.slane %v1075, 2
        %v1077 = vmax.f32 %v1075, %v1076
        %v1078 = vrot.slane %v1077, 1
        %v1079 = vmax.f32 %v1077, %v1078
        %v1080 = vsel %vm645, %v1062, 0.0
        %v1081 = vrot.slane %v1080, 4
        %v1082 = vadd.f32 %v1080, %v1081
        %v1083 = vrot.slane %v1082, 2
        %v1084 = vadd.f32 %v1082, %v1083
        %v1085 = vrot.slane %v1084, 1
        %v1086 = vadd.f32 %v1084, %v1085
        %v1087 = vsel %vm645, %v1064, 0.0
        %v1088 = vrot.slane %v1087, 4
        %v1089 = vadd.f32 %v1087, %v1088
        %v1090 = vrot.slane %v1089, 2
        %v1091 = vadd.f32 %v1089, %v1090
        %v1092 = vrot.slane %v1091, 1
        %v1093 = vadd.f32 %v1091, %v1092
        %v1094 = vrcp.pop 4.0
        %v1095 = vmul.f32 %v1086, %v1094
        %v1096 = vmul.f32 %v1093, %v1094
        %v1097 = vld [vmem:[#allocation8] sm:$0xff]
        %v1098 = vld [vmem:[#allocation8 + $0x8] sm:$0xff]
        %v1099 = vld [vmem:[#allocation8 + $0x10] sm:$0xff]
        %v1100 = vld [vmem:[#allocation8 + $0x18] sm:$0xff]
        %v1101 = vld [vmem:[#allocation8 + $0x20] sm:$0xff]
        %v1102 = vld [vmem:[#allocation8 + $0x28] sm:$0xff]
        %v1103 = vld [vmem:[#allocation8 + $0x30] sm:$0xff]
        %v1104 = vld [vmem:[#allocation8 + $0x38] sm:$0xff]
        %v1105 = vld [vmem:[#allocation8 + $0x40] sm:$0xff]
        %v1106 = vld [vmem:[#allocation8 + $0x48] sm:$0xff]
        %v1107 = vld [vmem:[#allocation8 + $0x50] sm:$0xff]
        %v1108 = vld [vmem:[#allocation8 + $0x58] sm:$0xff]
        %v1109 = vld [vmem:[#allocation8 + $0x60] sm:$0xff]
        %v1110 = vld [vmem:[#allocation8 + $0x68] sm:$0xff]
        %v1111 = vld [vmem:[#allocation8 + $0x70] sm:$0xff]
        %v1112 = vld [vmem:[#allocation8 + $0x78] sm:$0xff]
        %v1113 = vld [vmem:[#allocation8 + $0x80] sm:$0xff]
        %v1114 = vld [vmem:[#allocation8 + $0x88] sm:$0xff]
        %v1115 = vld [vmem:[#allocation8 + $0x90] sm:$0xff]
        %v1116 = vld [vmem:[#allocation8 + $0x98] sm:$0xff]
        %v1117 = vld [vmem:[#allocation8 + $0xa0] sm:$0xff]
        %v1118 = vld [vmem:[#allocation8 + $0xa8] sm:$0xff]
        %v1119 = vld [vmem:[#allocation8 + $0xb0] sm:$0xff]
        %v1120 = vld [vmem:[#allocation8 + $0xb8] sm:$0xff]
        %v1121 = vld [vmem:[#allocation8 + $0xc0] sm:$0xff]
        %v1122 = vld [vmem:[#allocation8 + $0xc8] sm:$0xff]
        %v1123 = vld [vmem:[#allocation8 + $0xd0] sm:$0xff]
        %v1124 = vld [vmem:[#allocation8 + $0xd8] sm:$0xff]
        %v1125 = vld [vmem:[#allocation8 + $0xe0] sm:$0xff]
        %v1126 = vld [vmem:[#allocation8 + $0xe8] sm:$0xff]
        %v1127 = vld [vmem:[#allocation8 + $0xf0] sm:$0xff]
        %v1128 = vld [vmem:[#allocation8 + $0xf8] sm:$0xff]
        %v1129 = vld [vmem:[#allocation8 + $0x100] sm:$0xff]
        %v1130 = vld [vmem:[#allocation8 + $0x108] sm:$0xff]
        %v1131 = vld [vmem:[#allocation8 + $0x110] sm:$0xff]
        %v1132 = vld [vmem:[#allocation8 + $0x118] sm:$0xff]
        %v1133 = vld [vmem:[#allocation8 + $0x120] sm:$0xff]
        %v1134 = vld [vmem:[#allocation8 + $0x128] sm:$0xff]
        %v1135 = vld [vmem:[#allocation8 + $0x130] sm:$0xff]
        %v1136 = vld [vmem:[#allocation8 + $0x138] sm:$0xff]
        %v1137 = vld [vmem:[#allocation8 + $0x140] sm:$0xff]
        %v1138 = vld [vmem:[#allocation8 + $0x148] sm:$0xff]
        %v1139 = vld [vmem:[#allocation8 + $0x150] sm:$0xff]
        %v1140 = vld [vmem:[#allocation8 + $0x158] sm:$0xff]
        %v1141 = vld [vmem:[#allocation8 + $0x160] sm:$0xff]
        %v1142 = vld [vmem:[#allocation8 + $0x168] sm:$0xff]
        %v1143 = vld [vmem:[#allocation8 + $0x170] sm:$0xff]
        %v1144 = vld [vmem:[#allocation8 + $0x178] sm:$0xff]
        %v1145 = vld [vmem:[#allocation8 + $0x180] sm:$0xff]
        %v1146 = vld [vmem:[#allocation8 + $0x188] sm:$0xff]
        %v1147 = vld [vmem:[#allocation8 + $0x190] sm:$0xff]
        %v1148 = vld [vmem:[#allocation8 + $0x198] sm:$0xff]
        %v1149 = vld [vmem:[#allocation8 + $0x1a0] sm:$0xff]
        %v1150 = vld [vmem:[#allocation8 + $0x1a8] sm:$0xff]
        %v1151 = vld [vmem:[#allocation8 + $0x1b0] sm:$0xff]
        %v1152 = vld [vmem:[#allocation8 + $0x1b8] sm:$0xff]
        %v1153 = vld [vmem:[#allocation8 + $0x1c0] sm:$0xff]
        %v1154 = vld [vmem:[#allocation8 + $0x1c8] sm:$0xff]
        %v1155 = vld [vmem:[#allocation8 + $0x1d0] sm:$0xff]
        %v1156 = vld [vmem:[#allocation8 + $0x1d8] sm:$0xff]
        %v1157 = vld [vmem:[#allocation8 + $0x1e0] sm:$0xff]
        %v1158 = vld [vmem:[#allocation8 + $0x1e8] sm:$0xff]
        %v1159 = vld [vmem:[#allocation8 + $0x1f0] sm:$0xff]
        %v1160 = vld [vmem:[#allocation8 + $0x1f8] sm:$0xff]
        %v1161 = vld [vmem:[#allocation8 + $0x200] sm:$0xff]
        %v1162 = vld [vmem:[#allocation8 + $0x208] sm:$0xff]
        %v1163 = vld [vmem:[#allocation8 + $0x210] sm:$0xff]
        %v1164 = vld [vmem:[#allocation8 + $0x218] sm:$0xff]
        %v1165 = vld [vmem:[#allocation8 + $0x220] sm:$0xff]
        %v1166 = vld [vmem:[#allocation8 + $0x228] sm:$0xff]
        %v1167 = vld [vmem:[#allocation8 + $0x230] sm:$0xff]
        %v1168 = vld [vmem:[#allocation8 + $0x238] sm:$0xff]
        %v1169 = vld [vmem:[#allocation8 + $0x240] sm:$0xff]
        %v1170 = vld [vmem:[#allocation8 + $0x248] sm:$0xff]
        %v1171 = vld [vmem:[#allocation8 + $0x250] sm:$0xff]
        %v1172 = vld [vmem:[#allocation8 + $0x258] sm:$0xff]
        %v1173 = vld [vmem:[#allocation8 + $0x260] sm:$0xff]
        %v1174 = vld [vmem:[#allocation8 + $0x268] sm:$0xff]
        %v1175 = vld [vmem:[#allocation8 + $0x270] sm:$0xff]
        %v1176 = vld [vmem:[#allocation8 + $0x278] sm:$0xff]
        %v1177 = vld [vmem:[#allocation8 + $0x280] sm:$0xff]
        %v1178 = vld [vmem:[#allocation8 + $0x288] sm:$0xff]
        %v1179 = vld [vmem:[#allocation8 + $0x290] sm:$0xff]
        %v1180 = vld [vmem:[#allocation8 + $0x298] sm:$0xff]
        %v1181 = vld [vmem:[#allocation8 + $0x2a0] sm:$0xff]
        %v1182 = vld [vmem:[#allocation8 + $0x2a8] sm:$0xff]
        %v1183 = vld [vmem:[#allocation8 + $0x2b0] sm:$0xff]
        %v1184 = vld [vmem:[#allocation8 + $0x2b8] sm:$0xff]
        %v1185 = vld [vmem:[#allocation8 + $0x2c0] sm:$0xff]
        %v1186 = vld [vmem:[#allocation8 + $0x2c8] sm:$0xff]
        %v1187 = vld [vmem:[#allocation8 + $0x2d0] sm:$0xff]
        %v1188 = vld [vmem:[#allocation8 + $0x2d8] sm:$0xff]
        %v1189 = vld [vmem:[#allocation8 + $0x2e0] sm:$0xff]
        %v1190 = vld [vmem:[#allocation8 + $0x2e8] sm:$0xff]
        %v1191 = vld [vmem:[#allocation8 + $0x2f0] sm:$0xff]
        %v1192 = vld [vmem:[#allocation8 + $0x2f8] sm:$0xff]
        %v1193 = vld [vmem:[#allocation8 + $0x300] sm:$0xff]
        %v1194 = vld [vmem:[#allocation8 + $0x308] sm:$0xff]
        %v1195 = vld [vmem:[#allocation8 + $0x310] sm:$0xff]
        %v1196 = vld [vmem:[#allocation8 + $0x318] sm:$0xff]
        %v1197 = vld [vmem:[#allocation8 + $0x320] sm:$0xff]
        %v1198 = vld [vmem:[#allocation8 + $0x328] sm:$0xff]
        %v1199 = vld [vmem:[#allocation8 + $0x330] sm:$0xff]
        %v1200 = vld [vmem:[#allocation8 + $0x338] sm:$0xff]
        %v1201 = vld [vmem:[#allocation8 + $0x340] sm:$0xff]
        %v1202 = vld [vmem:[#allocation8 + $0x348] sm:$0xff]
        %v1203 = vld [vmem:[#allocation8 + $0x350] sm:$0xff]
        %v1204 = vld [vmem:[#allocation8 + $0x358] sm:$0xff]
        %v1205 = vld [vmem:[#allocation8 + $0x360] sm:$0xff]
        %v1206 = vld [vmem:[#allocation8 + $0x368] sm:$0xff]
        %v1207 = vld [vmem:[#allocation8 + $0x370] sm:$0xff]
        %v1208 = vld [vmem:[#allocation8 + $0x378] sm:$0xff]
        %v1209 = vld [vmem:[#allocation8 + $0x380] sm:$0xff]
        %v1210 = vld [vmem:[#allocation8 + $0x388] sm:$0xff]
        %v1211 = vld [vmem:[#allocation8 + $0x390] sm:$0xff]
        %v1212 = vld [vmem:[#allocation8 + $0x398] sm:$0xff]
        %v1213 = vld [vmem:[#allocation8 + $0x3a0] sm:$0xff]
        %v1214 = vld [vmem:[#allocation8 + $0x3a8] sm:$0xff]
        %v1215 = vld [vmem:[#allocation8 + $0x3b0] sm:$0xff]
        %v1216 = vld [vmem:[#allocation8 + $0x3b8] sm:$0xff]
        %v1217 = vld [vmem:[#allocation8 + $0x3c0] sm:$0xff]
        %v1218 = vld [vmem:[#allocation8 + $0x3c8] sm:$0xff]
        %v1219 = vld [vmem:[#allocation8 + $0x3d0] sm:$0xff]
        %v1220 = vld [vmem:[#allocation8 + $0x3d8] sm:$0xff]
        %v1221 = vld [vmem:[#allocation8 + $0x3e0] sm:$0xff]
        %v1222 = vld [vmem:[#allocation8 + $0x3e8] sm:$0xff]
        %v1223 = vld [vmem:[#allocation8 + $0x3f0] sm:$0xff]
        %v1224 = vld [vmem:[#allocation8 + $0x3f8] sm:$0xff]
        %v1225 = vstv %s352
        %1226 = vmatprep.subr.mxu0 %v1128
        %1227 = vmatpush1.msra.mxu0 %v1127
        %1228 = vmatprep.subr.mxu0 %v1126
        %1229 = vmatpush1.msra.mxu0 %v1125
        %1230 = vmatprep.subr.mxu0 %v1124
        %1231 = vmatpush1.msra.mxu0 %v1123
        %1232 = vmatprep.subr.mxu0 %v1122
        %1233 = vmatpush1.msra.mxu0 %v1121
        %1234 = vmatprep.subr.mxu0 %v1120
        %1235 = vmatpush1.msra.mxu0 %v1119
        %1236 = vmatprep.subr.mxu0 %v1118
        %1237 = vmatpush1.msra.mxu0 %v1117
        %1238 = vmatprep.subr.mxu0 %v1116
        %1239 = vmatpush1.msra.mxu0 %v1115
        %1240 = vmatprep.subr.mxu0 %v1114
        %1241 = vmatpush1.msra.mxu0 %v1113
        %1242 = vmatprep.subr.mxu0 %v1112
        %1243 = vmatpush1.msra.mxu0 %v1111
        %1244 = vmatprep.subr.mxu0 %v1110
        %1245 = vmatpush1.msra.mxu0 %v1109
        %1246 = vmatprep.subr.mxu0 %v1108
        %1247 = vmatpush1.msra.mxu0 %v1107
        %1248 = vmatprep.subr.mxu0 %v1106
        %1249 = vmatpush1.msra.mxu0 %v1105
        %1250 = vmatprep.subr.mxu0 %v1104
        %1251 = vmatpush1.msra.mxu0 %v1103
        %1252 = vmatprep.subr.mxu0 %v1102
        %1253 = vmatpush1.msra.mxu0 %v1101
        %1254 = vmatprep.subr.mxu0 %v1100
        %1255 = vmatpush1.msra.mxu0 %v1099
        %1256 = vmatprep.subr.mxu0 %v1098
        %1257 = vmatpush1.msra.mxu0 %v1097
        %1258 = vmatprep.subr.mxu0 %v1160
        %1259 = vmatpush2.msra.mxu0 %v1159
        %1260 = vmatprep.subr.mxu0 %v1158
        %1261 = vmatpush2.msra.mxu0 %v1157
        %1262 = vmatprep.subr.mxu0 %v1156
        %1263 = vmatpush2.msra.mxu0 %v1155
        %1264 = vmatprep.subr.mxu0 %v1154
        %1265 = vmatpush2.msra.mxu0 %v1153
        %1266 = vmatprep.subr.mxu0 %v1152
        %1267 = vmatpush2.msra.mxu0 %v1151
        %1268 = vmatprep.subr.mxu0 %v1150
        %1269 = vmatpush2.msra.mxu0 %v1149
        %1270 = vmatprep.subr.mxu0 %v1148
        %1271 = vmatpush2.msra.mxu0 %v1147
        %1272 = vmatprep.subr.mxu0 %v1146
        %1273 = vmatpush2.msra.mxu0 %v1145
        %1274 = vmatprep.subr.mxu0 %v1144
        %1275 = vmatpush2.msra.mxu0 %v1143
        %1276 = vmatprep.subr.mxu0 %v1142
        %1277 = vmatpush2.msra.mxu0 %v1141
        %1278 = vmatprep.subr.mxu0 %v1140
        %1279 = vmatpush2.msra.mxu0 %v1139
        %1280 = vmatprep.subr.mxu0 %v1138
        %1281 = vmatpush2.msra.mxu0 %v1137
        %1282 = vmatprep.subr.mxu0 %v1136
        %1283 = vmatpush2.msra.mxu0 %v1135
        %1284 = vmatprep.subr.mxu0 %v1134
        %1285 = vmatpush2.msra.mxu0 %v1133
        %1286 = vmatprep.subr.mxu0 %v1132
        %1287 = vmatpush2.msra.mxu0 %v1131
        %1288 = vmatprep.subr.mxu0 %v1130
        %1289 = vmatpush2.msra.mxu0 %v1129
        %1290 = vmatprep.mubr.f32.mxu0 %v1079
        %1291 = vmatmul.mubr.f32.gmra.mxu0 %v1072
        %v1292 = vpop.f32.mrf.mxu0
        %v1293 = vadd.f32 %v1225, %v1292
        %v1294 = vpop.f32.mrf.mxu0
        %v1295 = vadd.f32 %v1225, %v1294
        %1296 = vdwg.mxu0
        %1297 = vmatprep.subr.mxu0 %v1192
        %1298 = vmatpush1.msra.mxu0 %v1191
        %1299 = vmatprep.subr.mxu0 %v1190
        %1300 = vmatpush1.msra.mxu0 %v1189
        %1301 = vmatprep.subr.mxu0 %v1188
        %1302 = vmatpush1.msra.mxu0 %v1187
        %1303 = vmatprep.subr.mxu0 %v1186
        %1304 = vmatpush1.msra.mxu0 %v1185
        %1305 = vmatprep.subr.mxu0 %v1184
        %1306 = vmatpush1.msra.mxu0 %v1183
        %1307 = vmatprep.subr.mxu0 %v1182
        %1308 = vmatpush1.msra.mxu0 %v1181
        %1309 = vmatprep.subr.mxu0 %v1180
        %1310 = vmatpush1.msra.mxu0 %v1179
        %1311 = vmatprep.subr.mxu0 %v1178
        %1312 = vmatpush1.msra.mxu0 %v1177
        %1313 = vmatprep.subr.mxu0 %v1176
        %1314 = vmatpush1.msra.mxu0 %v1175
        %1315 = vmatprep.subr.mxu0 %v1174
        %1316 = vmatpush1.msra.mxu0 %v1173
        %1317 = vmatprep.subr.mxu0 %v1172
        %1318 = vmatpush1.msra.mxu0 %v1171
        %1319 = vmatprep.subr.mxu0 %v1170
        %1320 = vmatpush1.msra.mxu0 %v1169
        %1321 = vmatprep.subr.mxu0 %v1168
        %1322 = vmatpush1.msra.mxu0 %v1167
        %1323 = vmatprep.subr.mxu0 %v1166
        %1324 = vmatpush1.msra.mxu0 %v1165
        %1325 = vmatprep.subr.mxu0 %v1164
        %1326 = vmatpush1.msra.mxu0 %v1163
        %1327 = vmatprep.subr.mxu0 %v1162
        %1328 = vmatpush1.msra.mxu0 %v1161
        %1329 = vmatprep.subr.mxu0 %v1224
        %1330 = vmatpush2.msra.mxu0 %v1223
        %1331 = vmatprep.subr.mxu0 %v1222
        %1332 = vmatpush2.msra.mxu0 %v1221
        %1333 = vmatprep.subr.mxu0 %v1220
        %1334 = vmatpush2.msra.mxu0 %v1219
        %1335 = vmatprep.subr.mxu0 %v1218
        %1336 = vmatpush2.msra.mxu0 %v1217
        %1337 = vmatprep.subr.mxu0 %v1216
        %1338 = vmatpush2.msra.mxu0 %v1215
        %1339 = vmatprep.subr.mxu0 %v1214
        %1340 = vmatpush2.msra.mxu0 %v1213
        %1341 = vmatprep.subr.mxu0 %v1212
        %1342 = vmatpush2.msra.mxu0 %v1211
        %1343 = vmatprep.subr.mxu0 %v1210
        %1344 = vmatpush2.msra.mxu0 %v1209
        %1345 = vmatprep.subr.mxu0 %v1208
        %1346 = vmatpush2.msra.mxu0 %v1207
        %1347 = vmatprep.subr.mxu0 %v1206
        %1348 = vmatpush2.msra.mxu0 %v1205
        %1349 = vmatprep.subr.mxu0 %v1204
        %1350 = vmatpush2.msra.mxu0 %v1203
        %1351 = vmatprep.subr.mxu0 %v1202
        %1352 = vmatpush2.msra.mxu0 %v1201
        %1353 = vmatprep.subr.mxu0 %v1200
        %1354 = vmatpush2.msra.mxu0 %v1199
        %1355 = vmatprep.subr.mxu0 %v1198
        %1356 = vmatpush2.msra.mxu0 %v1197
        %1357 = vmatprep.subr.mxu0 %v1196
        %1358 = vmatpush2.msra.mxu0 %v1195
        %1359 = vmatprep.subr.mxu0 %v1194
        %1360 = vmatpush2.msra.mxu0 %v1193
        %1361 = vmatprep.mubr.f32.mxu0 %v1096
        %1362 = vmatmul.mubr.f32.gmra.mxu0 %v1095
        %v1363 = vpop.f32.mrf.mxu0
        %v1364 = vadd.f32 %v1293, %v1363
        %v1365 = vpop.f32.mrf.mxu0
        %v1366 = vadd.f32 %v1295, %v1365
        %1367 = vdwg.mxu0
        %v1368 = vxor.u32 %v1364, 2147483648
        %v1369 = vxor.u32 %v1366, 2147483648
        %v1370 = vmul.f32 %v1368, 1.442695
        %v1371 = vpow.pop %v1370
        %v1372 = vmul.f32 %v1369, 1.442695
        %v1373 = vpow.pop %v1372
        %v1374 = vadd.f32 %v1371, 1.0
        %v1375 = vadd.f32 %v1373, 1.0
        %v1376 = vrcp.pop %v1374
        %v1377 = vmul.f32 1.0, %v1376
        %v1378 = vrcp.pop %v1375
        %v1379 = vmul.f32 1.0, %v1378
        %v1380 = vlaneseq
        %v1381 = vshrl.u32 %v1380, 7
        %v1382 = vsub.s32 0, %v1381
        %v1383 = vrot.slane %v1377, %v1382
        %v1384 = vlaneseq
        %v1385 = vshrl.u32 %v1384, 7
        %v1386 = vsub.s32 0, %v1385
        %v1387 = vrot.slane %v1379, %v1386
        %v1390 = vcombine.low %v1383, %v1387
        %v1392 = vmul.f32 %v1062, %v1390
        %v1393 = vadd.f32 %v1392, %v353
        %1394 = vst [vmem:[%s343] sm:$0xff] %v1393
        %s1395 = sand.u32 %s206, 1
        %s1396 = scalar_lea.sflag [#allocation5], %s1395
        %s1397 = sand.u32 %s206, 1
        %s1398 = smul.addr %s1397, 8
        %s1399 = scalar_lea.vmem [#allocation9], %s1398
        // Predicated region
        $region65: #{tpu_custom_call.1} parent=51 // pred_check
          %p1400 = pneg %p216
        $region66: #{tpu_custom_call.1} parent=51 // pred_check_branch
          %1402 = sbr.rel (%p1400) target = $region68
        $region67: #{tpu_custom_call.1} parent=51 // pred_region
          %s1404 = ssub.s32 128, 128
          %1405 = vsyncadd %s1396, %s1404
          %s1406 = smul.addr %s25, 2
          %s1407 = smul.addr %s1406, 64
          %s1408 = scalar_lea.hbm %s8, %s1407
          %s1410 = sshll.u32 %s1399, 4
          %s1411 = int_to_ptr.vmem [resolvable:$true] %s1410
          %1413 = dma.vmem_to_hbm [thread:$0]  %s1411, 128, %s1408, %s1396
        $region68: #{tpu_custom_call.1} parent=51 // pred_fallthru
          _
      $region52: #{tpu_custom_call.1} parent=5 // pred_fallthru
        _
      %p1414 = scmp.le.s32.totalorder 2, %s20
      // Predicated region
      $region69: #{tpu_custom_call.1} parent=5 // pred_check
        %p1415 = pneg %p1414
      $region70: #{tpu_custom_call.1} parent=5 // pred_check_branch
        %1417 = sbr.rel (%p1415) target = $region72
      $region71: #{tpu_custom_call.1} parent=5 // pred_region
        %s1418 = ssub.s32 %s20, 2
        // Predicated region
        $region73: #{tpu_custom_call.1} parent=71 // pred_check
          %p1419 = pneg %p222
        $region74: #{tpu_custom_call.1} parent=71 // pred_check_branch
          %1421 = sbr.rel (%p1419) target = $region76
        $region75: #{tpu_custom_call.1} parent=71 // pred_region
          %s1422 = sand.u32 %s207, 1
          %s1423 = scalar_lea.sflag [#allocation5], %s1422
          %s1424 = sand.u32 %s207, 1
          %s1425 = smul.addr %s1424, 8
          %s1426 = scalar_lea.vmem [#allocation9], %s1425
          %1427 = dma.done %s1423, 128
        $region76: #{tpu_custom_call.1} parent=71 // pred_fallthru
          _
      $region72: #{tpu_custom_call.1} parent=5 // pred_fallthru
        _
    $region6: #{tpu_custom_call.1} parent=1 // loop_footer
      %s24 = sadd.s32 1, %s20
    $region7: #{tpu_custom_call.1} parent=1 // loop_footer_branch
      %19 = sbr.rel target = $region3
    $region8: #{tpu_custom_call.1} parent=1 // loop_exit
      _
    %1428 = vsyncpa [#allocation4], 1
    %s1429 = scalar_lea.sflag [#allocation4], 1
    %1430 = vsyncpa %s1429, 1
    %1431 = vsyncpa [#allocation7], 1
    %1432 = vsyncpa [#allocation5], 1
    %s1433 = scalar_lea.sflag [#allocation5], 1
    %1434 = vsyncpa %s1433, 1

</llo_original>
